<compile_context>
chip_gen: v7x
topology: tpu7x:2x2x1
jax: 0.10.0
libtpu: 0.0.40
codegen_flags: <defaults>
</compile_context>

<pallas_src>
import functools

import jax
import jax.numpy as jnp
from jax.experimental import pallas as pl
from jax.experimental.pallas import tpu as pltpu


# ------------------------------ fused kernel --------------------------------

def _bottleneck_kernel(x_ref, w1_ref, b1_ref, w2_ref, b2_ref, w3_ref, b3_ref,
                       o_ref, *, width):
    """One image per grid step. Activations are (channels, H*W): channels on
    sublanes, flattened spatial on the (dense) lane axis."""
    _, C, HW = x_ref.shape
    c_mid = w1_ref.shape[0]
    cdt = w1_ref.dtype                      # MXU compute dtype (f32 or bf16)
    W = width
    PAD = W + 1                             # covers the largest tap offset

    # ---- stage 1: 1x1 conv (BN scale pre-folded into w1) + bias + ReLU ------
    y1 = jnp.dot(w1_ref[...], x_ref[0].astype(cdt),
                 preferred_element_type=jnp.float32)            # (c_mid, HW)
    y1 = jnp.maximum(y1 + b1_ref[...], 0.0)

    # ---- stage 2: 3x3 SAME conv = 9 lane-shifted taps, each a small dot -----
    # Zero-extend along the lane axis so row under/overflow reads zeros; the
    # per-row wrap of the +-1 column shifts is killed by two iota-based masks.
    zpad = jnp.zeros((c_mid, PAD), jnp.float32)
    y1x = jnp.concatenate([zpad, y1, zpad], axis=-1)            # (c_mid, HW + 2*PAD)

    col = jax.lax.broadcasted_iota(jnp.int32, (1, HW), 1) % W   # output column index
    ok_left = col >= 1                                          # reading w-1 is valid
    ok_right = col <= W - 2                                     # reading w+1 is valid

    w2_all = w2_ref[...]                                        # (9, c_mid, c_mid)
    acc = jnp.zeros((c_mid, HW), jnp.float32)
    for t, (dy, dx) in enumerate([(dy, dx) for dy in (-1, 0, 1)
                                  for dx in (-1, 0, 1)]):
        off = dy * W + dx
        tap = y1x[:, PAD + off:PAD + off + HW]                  # (c_mid, HW)
        if dx == -1:
            tap = jnp.where(ok_left, tap, 0.0)
        elif dx == 1:
            tap = jnp.where(ok_right, tap, 0.0)
        acc += jnp.dot(w2_all[t], tap.astype(cdt),
                       preferred_element_type=jnp.float32)
    y2 = jnp.maximum(acc + b2_ref[...], 0.0)                    # (c_mid, HW)

    # ---- stage 3: 1x1 conv + bias + ReLU + DropPath(identity) + residual ----
    y3 = jnp.dot(w3_ref[...], y2.astype(cdt),
                 preferred_element_type=jnp.float32)            # (C, HW)
    y3 = jnp.maximum(y3 + b3_ref[...], 0.0)
    # Residual: re-read the VMEM-resident input block instead of keeping it live.
    o_ref[0] = (y3 + x_ref[0].astype(jnp.float32)).astype(o_ref.dtype)


# ------------------------------- wrapper -------------------------------------

def bottleneck_forward(x, params, compute_dtype=jnp.float32):
    """x: (N, C, H, W) (PyTorch NCHW layout). Returns (N, C, H, W)."""
    N, C, H, W = x.shape
    HW = H * W
    c_mid = params['w1'].shape[0]

    # Free layout plumbing: H*W is already contiguous in NCHW.
    x_flat = x.reshape(N, C, HW)

    # Matmul operands in the compute dtype; bias / epilogue stay f32.
    w1 = params['w1'].astype(compute_dtype)   # (c_mid, C), BN scale folded in
    w2 = params['w2'].astype(compute_dtype)   # (9, c_mid, c_mid), tap-major
    w3 = params['w3'].astype(compute_dtype)   # (C, c_mid), BN scale folded in

    def full(shape):
        return pl.BlockSpec(shape, lambda n, _r=len(shape): (0,) * _r)

    # grid=(N,) + "parallel": on v7x each TensorCore takes one image; on
    # single-TC v5e/v6e the extra grid step costs ~0.35us at this size.
    # TODO(synk): optionally collapse N into the matmul M dim on v5e/v6e, and
    # add 1-row-halo H tiling + explicit vmem_limit_bytes before scaling H/W/C
    # (v7x has only 64 MiB VMEM).
    out_flat = pl.pallas_call(
        functools.partial(_bottleneck_kernel, width=W),
        out_shape=jax.ShapeDtypeStruct((N, C, HW), x.dtype),
        grid=(N,),
        in_specs=[
            pl.BlockSpec((1, C, HW), lambda n: (n, 0, 0)),   # x (conv in + residual)
            full((c_mid, C)), full((c_mid, 1)),              # stage 1
            full((9, c_mid, c_mid)), full((c_mid, 1)),       # stage 2
            full((C, c_mid)), full((C, 1)),                  # stage 3
        ],
        out_specs=pl.BlockSpec((1, C, HW), lambda n: (n, 0, 0)),
        compiler_params=pltpu.CompilerParams(dimension_semantics=("parallel",)),
    )(x_flat, w1, params['b1'], w2, params['b2'], w3, params['b3'])
    return out_flat.reshape(N, C, H, W)


# ------------------------- parameter construction ---------------------------

def _fold_bn(gamma, beta, mean, var, eps=1e-5):
    s = gamma / jnp.sqrt(var + eps)     # per-output-channel scale
    t = beta - mean * s                 # per-output-channel shift
    return s, t


def make_params(key, c_in, c_out, reduction=4):
    c_mid = c_out // reduction
    ks = jax.random.split(key, 9)

    def conv_init(k, shape):
        return 0.1 * jax.random.normal(k, shape, jnp.float32)

    def bn_init(k, c):
        k1, k2, k3, k4 = jax.random.split(k, 4)
        gamma = 1.0 + 0.1 * jax.random.normal(k1, (c,), jnp.float32)
        beta = 0.1 * jax.random.normal(k2, (c,), jnp.float32)
        mean = 0.1 * jax.random.normal(k3, (c,), jnp.float32)
        var = jax.random.uniform(k4, (c,), jnp.float32, 0.5, 1.5)
        return gamma, beta, mean, var

    # PyTorch-layout (OIHW) conv weights + biases
    w1_oihw = conv_init(ks[0], (c_mid, c_in, 1, 1)); b1 = conv_init(ks[1], (c_mid,))
    w2_oihw = conv_init(ks[2], (c_mid, c_mid, 3, 3)); b2 = conv_init(ks[3], (c_mid,))
    w3_oihw = conv_init(ks[4], (c_out, c_mid, 1, 1)); b3 = conv_init(ks[5], (c_out,))
    bn1 = bn_init(ks[6], c_mid)
    bn2 = bn_init(ks[7], c_mid)
    bn3 = bn_init(ks[8], c_out)

    s1, t1 = _fold_bn(*bn1)
    s2, t2 = _fold_bn(*bn2)
    s3, t3 = _fold_bn(*bn3)

    # Fold BN scale into the conv weights (per output channel); keep only bias.
    w2_taps = jnp.transpose(w2_oihw, (2, 3, 0, 1)).reshape(9, c_mid, c_mid)
    params = {
        'w1': s1[:, None] * w1_oihw[:, :, 0, 0],            # (c_mid, c_in)
        'b1': (s1 * b1 + t1)[:, None],                      # (c_mid, 1)
        'w2': s2[None, :, None] * w2_taps,                  # (9, c_mid, c_mid)
        'b2': (s2 * b2 + t2)[:, None],                      # (c_mid, 1)
        'w3': s3[:, None] * w3_oihw[:, :, 0, 0],            # (c_out, c_mid)
        'b3': (s3 * b3 + t3)[:, None],                      # (c_out, 1)
    }
    raw = [(w1_oihw, b1) + bn1, (w2_oihw, b2) + bn2, (w3_oihw, b3) + bn3]
    return params, raw


# ------------------------------ pure-JAX ref ---------------------------------

def ref_forward(x, raw, eps=1e-5):
    """Pure-JAX/XLA eval-mode reference in NCHW (matches the PyTorch module)."""
    def cba(x, w_oihw, b, gamma, beta, mean, var):
        y = jax.lax.conv_general_dilated(
            x, w_oihw, (1, 1), 'SAME',
            dimension_numbers=('NCHW', 'OIHW', 'NCHW'))
        sh = (1, -1, 1, 1)
        y = y + b.reshape(sh)
        y = (y - mean.reshape(sh)) / jnp.sqrt(var.reshape(sh) + eps) \
            * gamma.reshape(sh) + beta.reshape(sh)
        return jnp.maximum(y, 0.0)
    res = x
    y = cba(x, *raw[0])
    y = cba(y, *raw[1])
    y = cba(y, *raw[2])
    return y + res                      # DropPath(p=0.1) is identity in eval mode


# ---------------------------------- main -------------------------------------

if __name__ == "__main__":
    key = jax.random.PRNGKey(0)
    kx, kp = jax.random.split(key)

    N, C, H, W = 2, 16, 16, 16          # in_features = out_features = 16, reduction = 4
    x = jax.random.normal(kx, (N, C, H, W), jnp.float32)     # NCHW (PyTorch layout)

    params, raw = make_params(kp, C, C, reduction=4)
    ref = jax.block_until_ready(ref_forward(x, raw))

    # f32 MXU path — tight check against the pure-JAX/XLA reference
    out = jax.block_until_ready(bottleneck_forward(x, params))
    assert out.shape == ref.shape
    assert bool(jnp.allclose(out, ref, atol=1e-4, rtol=1e-4)), "f32 mismatch vs reference"

    # bf16 matmul-operand path (slicing/masking/bias/ReLU/residual stay f32)
    out_bf16 = jax.block_until_ready(
        bottleneck_forward(x, params, compute_dtype=jnp.bfloat16))
    assert bool(jnp.allclose(out_bf16, ref, atol=5e-2, rtol=5e-2)), "bf16 path mismatch"

    print("KERNEL_OK")
</pallas_src>

<mosaic_0001>
module attributes {stable_mosaic.version = 11 : i64} {
  func.func @_bottleneck_kernel(%arg0: i32, %arg1: memref<1x16x256xf32, #tpu.memory_space<vmem>>, %arg2: memref<4x16xf32, #tpu.memory_space<vmem>>, %arg3: memref<4x1xf32, #tpu.memory_space<vmem>>, %arg4: memref<9x4x4xf32, #tpu.memory_space<vmem>>, %arg5: memref<4x1xf32, #tpu.memory_space<vmem>>, %arg6: memref<16x4xf32, #tpu.memory_space<vmem>>, %arg7: memref<16x1xf32, #tpu.memory_space<vmem>>, %arg8: memref<1x16x256xf32, #tpu.memory_space<vmem>>) attributes {dimension_semantics = [#tpu.dimension_semantics<parallel>], iteration_bounds = array<i64: 2>, scalar_prefetch = 0 : i64, scratch_operands = 0 : i64, tpu.core_type = #tpu.core_type<tc>, window_params = [{transform_indices = @transform_0, window_bounds = array<i64: 1, 16, 256>}, {pipeline_mode = #tpu.pipeline_mode<synchronous>, transform_indices = @transform_1, window_bounds = array<i64: 4, 16>}, {pipeline_mode = #tpu.pipeline_mode<synchronous>, transform_indices = @transform_2, window_bounds = array<i64: 4, 1>}, {pipeline_mode = #tpu.pipeline_mode<synchronous>, transform_indices = @transform_3, window_bounds = array<i64: 9, 4, 4>}, {pipeline_mode = #tpu.pipeline_mode<synchronous>, transform_indices = @transform_4, window_bounds = array<i64: 4, 1>}, {pipeline_mode = #tpu.pipeline_mode<synchronous>, transform_indices = @transform_5, window_bounds = array<i64: 16, 4>}, {pipeline_mode = #tpu.pipeline_mode<synchronous>, transform_indices = @transform_6, window_bounds = array<i64: 16, 1>}, {transform_indices = @transform_7, window_bounds = array<i64: 1, 16, 256>}]} {
    %c0 = arith.constant 0 : index
    %c0_0 = arith.constant 0 : index
    %0 = vector.load %arg2[%c0, %c0_0] : memref<4x16xf32, #tpu.memory_space<vmem>>, vector<4x16xf32>
    %c0_1 = arith.constant 0 : index
    %c0_2 = arith.constant 0 : index
    %c0_3 = arith.constant 0 : index
    %1 = vector.load %arg1[%c0_1, %c0_2, %c0_3] : memref<1x16x256xf32, #tpu.memory_space<vmem>>, vector<1x16x256xf32>
    %2 = vector.shape_cast %1 : vector<1x16x256xf32> to vector<16x256xf32>
    %cst = arith.constant dense<0.000000e+00> : vector<4x256xf32>
    %3 = tpu.matmul %0, %2, %cst {dimension_numbers = #tpu.dot_dimension_numbers<[1], [0], [0], [1], [0, 0, 1, 1], [], []>} : vector<4x16xf32>, vector<16x256xf32>, vector<4x256xf32> -> vector<4x256xf32>
    %c0_4 = arith.constant 0 : index
    %c0_5 = arith.constant 0 : index
    %4 = vector.load %arg3[%c0_4, %c0_5] : memref<4x1xf32, #tpu.memory_space<vmem>>, vector<4x1xf32>
    %5 = vector.broadcast %4 : vector<4x1xf32> to vector<4x256xf32>
    %6 = arith.addf %3, %5 : vector<4x256xf32>
    %cst_6 = arith.constant 0.000000e+00 : f32
    %7 = vector.broadcast %cst_6 : f32 to vector<4x256xf32>
    %8 = arith.maximumf %6, %7 : vector<4x256xf32>
    %cst_7 = arith.constant 0.000000e+00 : f32
    %9 = vector.broadcast %cst_7 : f32 to vector<4x17xf32>
    %10 = tpu.concatenate %9, %8, %9 in 1 : vector<4x17xf32>, vector<4x256xf32>, vector<4x17xf32> -> vector<4x290xf32>
    %11 = tpu.iota {dimensions = array<i32: 1>} : vector<1x256xi32>
    %c16_i32 = arith.constant 16 : i32
    %c0_i32 = arith.constant 0 : i32
    %12 = arith.cmpi eq, %c16_i32, %c0_i32 : i32
    %c1_i32 = arith.constant 1 : i32
    %13 = arith.select %12, %c1_i32, %c16_i32 : i32
    %14 = vector.broadcast %13 : i32 to vector<1x256xi32>
    %15 = arith.remsi %11, %14 : vector<1x256xi32>
    %c0_i32_8 = arith.constant 0 : i32
    %16 = vector.broadcast %c0_i32_8 : i32 to vector<1x256xi32>
    %17 = arith.cmpi ne, %15, %16 : vector<1x256xi32>
    %c0_i32_9 = arith.constant 0 : i32
    %18 = vector.broadcast %c0_i32_9 : i32 to vector<1x256xi32>
    %19 = arith.cmpi slt, %15, %18 : vector<1x256xi32>
    %c0_i32_10 = arith.constant 0 : i32
    %20 = arith.cmpi slt, %13, %c0_i32_10 : i32
    %21 = vector.broadcast %20 : i1 to vector<1x256xi1>
    %22 = vector.broadcast %21 : vector<1x256xi1> to vector<1x256xi1>
    %23 = arith.xori %19, %22 : vector<1x256xi1>
    %24 = arith.andi %23, %17 : vector<1x256xi1>
    %25 = vector.broadcast %13 : i32 to vector<1x256xi32>
    %26 = arith.addi %15, %25 : vector<1x256xi32>
    %27 = arith.select %24, %26, %15 : vector<1x256xi1>, vector<1x256xi32>
    %c1_i32_11 = arith.constant 1 : i32
    %28 = vector.broadcast %c1_i32_11 : i32 to vector<1x256xi32>
    %29 = arith.cmpi sge, %27, %28 : vector<1x256xi32>
    %c14_i32 = arith.constant 14 : i32
    %30 = vector.broadcast %c14_i32 : i32 to vector<1x256xi32>
    %31 = arith.cmpi sle, %27, %30 : vector<1x256xi32>
    %c0_12 = arith.constant 0 : index
    %c0_13 = arith.constant 0 : index
    %c0_14 = arith.constant 0 : index
    %32 = vector.load %arg4[%c0_12, %c0_13, %c0_14] : memref<9x4x4xf32, #tpu.memory_space<vmem>>, vector<9x4x4xf32>
    %cst_15 = arith.constant 0.000000e+00 : f32
    %33 = vector.broadcast %cst_15 : f32 to vector<4x256xf32>
    %34 = vector.extract_strided_slice %10 {offsets = [0, 0], sizes = [4, 256], strides = [1, 1]} : vector<4x290xf32> to vector<4x256xf32>
    %cst_16 = arith.constant 0.000000e+00 : f32
    %35 = vector.shape_cast %29 : vector<1x256xi1> to vector<1x256xi1>
    %36 = vector.broadcast %35 : vector<1x256xi1> to vector<4x256xi1>
    %37 = vector.broadcast %cst_16 : f32 to vector<4x256xf32>
    %38 = arith.select %36, %34, %37 : vector<4x256xi1>, vector<4x256xf32>
    %39 = vector.extract_strided_slice %32 {offsets = [0, 0, 0], sizes = [1, 4, 4], strides = [1, 1, 1]} : vector<9x4x4xf32> to vector<1x4x4xf32>
    %40 = vector.shape_cast %39 : vector<1x4x4xf32> to vector<4x4xf32>
    %cst_17 = arith.constant dense<0.000000e+00> : vector<4x256xf32>
    %41 = tpu.matmul %40, %38, %cst_17 {dimension_numbers = #tpu.dot_dimension_numbers<[1], [0], [0], [1], [0, 0, 1, 1], [], []>} : vector<4x4xf32>, vector<4x256xf32>, vector<4x256xf32> -> vector<4x256xf32>
    %42 = arith.addf %33, %41 : vector<4x256xf32>
    %43 = vector.extract_strided_slice %10 {offsets = [0, 1], sizes = [4, 256], strides = [1, 1]} : vector<4x290xf32> to vector<4x256xf32>
    %44 = vector.extract_strided_slice %32 {offsets = [1, 0, 0], sizes = [1, 4, 4], strides = [1, 1, 1]} : vector<9x4x4xf32> to vector<1x4x4xf32>
    %45 = vector.shape_cast %44 : vector<1x4x4xf32> to vector<4x4xf32>
    %cst_18 = arith.constant dense<0.000000e+00> : vector<4x256xf32>
    %46 = tpu.matmul %45, %43, %cst_18 {dimension_numbers = #tpu.dot_dimension_numbers<[1], [0], [0], [1], [0, 0, 1, 1], [], []>} : vector<4x4xf32>, vector<4x256xf32>, vector<4x256xf32> -> vector<4x256xf32>
    %47 = arith.addf %42, %46 : vector<4x256xf32>
    %48 = vector.extract_strided_slice %10 {offsets = [0, 2], sizes = [4, 256], strides = [1, 1]} : vector<4x290xf32> to vector<4x256xf32>
    %cst_19 = arith.constant 0.000000e+00 : f32
    %49 = vector.shape_cast %31 : vector<1x256xi1> to vector<1x256xi1>
    %50 = vector.broadcast %49 : vector<1x256xi1> to vector<4x256xi1>
    %51 = vector.broadcast %cst_19 : f32 to vector<4x256xf32>
    %52 = arith.select %50, %48, %51 : vector<4x256xi1>, vector<4x256xf32>
    %53 = vector.extract_strided_slice %32 {offsets = [2, 0, 0], sizes = [1, 4, 4], strides = [1, 1, 1]} : vector<9x4x4xf32> to vector<1x4x4xf32>
    %54 = vector.shape_cast %53 : vector<1x4x4xf32> to vector<4x4xf32>
    %cst_20 = arith.constant dense<0.000000e+00> : vector<4x256xf32>
    %55 = tpu.matmul %54, %52, %cst_20 {dimension_numbers = #tpu.dot_dimension_numbers<[1], [0], [0], [1], [0, 0, 1, 1], [], []>} : vector<4x4xf32>, vector<4x256xf32>, vector<4x256xf32> -> vector<4x256xf32>
    %56 = arith.addf %47, %55 : vector<4x256xf32>
    %57 = vector.extract_strided_slice %10 {offsets = [0, 16], sizes = [4, 256], strides = [1, 1]} : vector<4x290xf32> to vector<4x256xf32>
    %cst_21 = arith.constant 0.000000e+00 : f32
    %58 = vector.shape_cast %29 : vector<1x256xi1> to vector<1x256xi1>
    %59 = vector.broadcast %58 : vector<1x256xi1> to vector<4x256xi1>
    %60 = vector.broadcast %cst_21 : f32 to vector<4x256xf32>
    %61 = arith.select %59, %57, %60 : vector<4x256xi1>, vector<4x256xf32>
    %62 = vector.extract_strided_slice %32 {offsets = [3, 0, 0], sizes = [1, 4, 4], strides = [1, 1, 1]} : vector<9x4x4xf32> to vector<1x4x4xf32>
    %63 = vector.shape_cast %62 : vector<1x4x4xf32> to vector<4x4xf32>
    %cst_22 = arith.constant dense<0.000000e+00> : vector<4x256xf32>
    %64 = tpu.matmul %63, %61, %cst_22 {dimension_numbers = #tpu.dot_dimension_numbers<[1], [0], [0], [1], [0, 0, 1, 1], [], []>} : vector<4x4xf32>, vector<4x256xf32>, vector<4x256xf32> -> vector<4x256xf32>
    %65 = arith.addf %56, %64 : vector<4x256xf32>
    %66 = vector.extract_strided_slice %10 {offsets = [0, 17], sizes = [4, 256], strides = [1, 1]} : vector<4x290xf32> to vector<4x256xf32>
    %67 = vector.extract_strided_slice %32 {offsets = [4, 0, 0], sizes = [1, 4, 4], strides = [1, 1, 1]} : vector<9x4x4xf32> to vector<1x4x4xf32>
    %68 = vector.shape_cast %67 : vector<1x4x4xf32> to vector<4x4xf32>
    %cst_23 = arith.constant dense<0.000000e+00> : vector<4x256xf32>
    %69 = tpu.matmul %68, %66, %cst_23 {dimension_numbers = #tpu.dot_dimension_numbers<[1], [0], [0], [1], [0, 0, 1, 1], [], []>} : vector<4x4xf32>, vector<4x256xf32>, vector<4x256xf32> -> vector<4x256xf32>
    %70 = arith.addf %65, %69 : vector<4x256xf32>
    %71 = vector.extract_strided_slice %10 {offsets = [0, 18], sizes = [4, 256], strides = [1, 1]} : vector<4x290xf32> to vector<4x256xf32>
    %cst_24 = arith.constant 0.000000e+00 : f32
    %72 = vector.shape_cast %31 : vector<1x256xi1> to vector<1x256xi1>
    %73 = vector.broadcast %72 : vector<1x256xi1> to vector<4x256xi1>
    %74 = vector.broadcast %cst_24 : f32 to vector<4x256xf32>
    %75 = arith.select %73, %71, %74 : vector<4x256xi1>, vector<4x256xf32>
    %76 = vector.extract_strided_slice %32 {offsets = [5, 0, 0], sizes = [1, 4, 4], strides = [1, 1, 1]} : vector<9x4x4xf32> to vector<1x4x4xf32>
    %77 = vector.shape_cast %76 : vector<1x4x4xf32> to vector<4x4xf32>
    %cst_25 = arith.constant dense<0.000000e+00> : vector<4x256xf32>
    %78 = tpu.matmul %77, %75, %cst_25 {dimension_numbers = #tpu.dot_dimension_numbers<[1], [0], [0], [1], [0, 0, 1, 1], [], []>} : vector<4x4xf32>, vector<4x256xf32>, vector<4x256xf32> -> vector<4x256xf32>
    %79 = arith.addf %70, %78 : vector<4x256xf32>
    %80 = vector.extract_strided_slice %10 {offsets = [0, 32], sizes = [4, 256], strides = [1, 1]} : vector<4x290xf32> to vector<4x256xf32>
    %cst_26 = arith.constant 0.000000e+00 : f32
    %81 = vector.shape_cast %29 : vector<1x256xi1> to vector<1x256xi1>
    %82 = vector.broadcast %81 : vector<1x256xi1> to vector<4x256xi1>
    %83 = vector.broadcast %cst_26 : f32 to vector<4x256xf32>
    %84 = arith.select %82, %80, %83 : vector<4x256xi1>, vector<4x256xf32>
    %85 = vector.extract_strided_slice %32 {offsets = [6, 0, 0], sizes = [1, 4, 4], strides = [1, 1, 1]} : vector<9x4x4xf32> to vector<1x4x4xf32>
    %86 = vector.shape_cast %85 : vector<1x4x4xf32> to vector<4x4xf32>
    %cst_27 = arith.constant dense<0.000000e+00> : vector<4x256xf32>
    %87 = tpu.matmul %86, %84, %cst_27 {dimension_numbers = #tpu.dot_dimension_numbers<[1], [0], [0], [1], [0, 0, 1, 1], [], []>} : vector<4x4xf32>, vector<4x256xf32>, vector<4x256xf32> -> vector<4x256xf32>
    %88 = arith.addf %79, %87 : vector<4x256xf32>
    %89 = vector.extract_strided_slice %10 {offsets = [0, 33], sizes = [4, 256], strides = [1, 1]} : vector<4x290xf32> to vector<4x256xf32>
    %90 = vector.extract_strided_slice %32 {offsets = [7, 0, 0], sizes = [1, 4, 4], strides = [1, 1, 1]} : vector<9x4x4xf32> to vector<1x4x4xf32>
    %91 = vector.shape_cast %90 : vector<1x4x4xf32> to vector<4x4xf32>
    %cst_28 = arith.constant dense<0.000000e+00> : vector<4x256xf32>
    %92 = tpu.matmul %91, %89, %cst_28 {dimension_numbers = #tpu.dot_dimension_numbers<[1], [0], [0], [1], [0, 0, 1, 1], [], []>} : vector<4x4xf32>, vector<4x256xf32>, vector<4x256xf32> -> vector<4x256xf32>
    %93 = arith.addf %88, %92 : vector<4x256xf32>
    %94 = vector.extract_strided_slice %10 {offsets = [0, 34], sizes = [4, 256], strides = [1, 1]} : vector<4x290xf32> to vector<4x256xf32>
    %cst_29 = arith.constant 0.000000e+00 : f32
    %95 = vector.shape_cast %31 : vector<1x256xi1> to vector<1x256xi1>
    %96 = vector.broadcast %95 : vector<1x256xi1> to vector<4x256xi1>
    %97 = vector.broadcast %cst_29 : f32 to vector<4x256xf32>
    %98 = arith.select %96, %94, %97 : vector<4x256xi1>, vector<4x256xf32>
    %99 = vector.extract_strided_slice %32 {offsets = [8, 0, 0], sizes = [1, 4, 4], strides = [1, 1, 1]} : vector<9x4x4xf32> to vector<1x4x4xf32>
    %100 = vector.shape_cast %99 : vector<1x4x4xf32> to vector<4x4xf32>
    %cst_30 = arith.constant dense<0.000000e+00> : vector<4x256xf32>
    %101 = tpu.matmul %100, %98, %cst_30 {dimension_numbers = #tpu.dot_dimension_numbers<[1], [0], [0], [1], [0, 0, 1, 1], [], []>} : vector<4x4xf32>, vector<4x256xf32>, vector<4x256xf32> -> vector<4x256xf32>
    %102 = arith.addf %93, %101 : vector<4x256xf32>
    %c0_31 = arith.constant 0 : index
    %c0_32 = arith.constant 0 : index
    %103 = vector.load %arg5[%c0_31, %c0_32] : memref<4x1xf32, #tpu.memory_space<vmem>>, vector<4x1xf32>
    %104 = vector.broadcast %103 : vector<4x1xf32> to vector<4x256xf32>
    %105 = arith.addf %102, %104 : vector<4x256xf32>
    %cst_33 = arith.constant 0.000000e+00 : f32
    %106 = vector.broadcast %cst_33 : f32 to vector<4x256xf32>
    %107 = arith.maximumf %105, %106 : vector<4x256xf32>
    %c0_34 = arith.constant 0 : index
    %c0_35 = arith.constant 0 : index
    %108 = vector.load %arg6[%c0_34, %c0_35] : memref<16x4xf32, #tpu.memory_space<vmem>>, vector<16x4xf32>
    %cst_36 = arith.constant dense<0.000000e+00> : vector<16x256xf32>
    %109 = tpu.matmul %108, %107, %cst_36 {dimension_numbers = #tpu.dot_dimension_numbers<[1], [0], [0], [1], [0, 0, 1, 1], [], []>} : vector<16x4xf32>, vector<4x256xf32>, vector<16x256xf32> -> vector<16x256xf32>
    %c0_37 = arith.constant 0 : index
    %c0_38 = arith.constant 0 : index
    %110 = vector.load %arg7[%c0_37, %c0_38] : memref<16x1xf32, #tpu.memory_space<vmem>>, vector<16x1xf32>
    %111 = vector.broadcast %110 : vector<16x1xf32> to vector<16x256xf32>
    %112 = arith.addf %109, %111 : vector<16x256xf32>
    %cst_39 = arith.constant 0.000000e+00 : f32
    %113 = vector.broadcast %cst_39 : f32 to vector<16x256xf32>
    %114 = arith.maximumf %112, %113 : vector<16x256xf32>
    %c0_40 = arith.constant 0 : index
    %c0_41 = arith.constant 0 : index
    %c0_42 = arith.constant 0 : index
    %115 = vector.load %arg1[%c0_40, %c0_41, %c0_42] : memref<1x16x256xf32, #tpu.memory_space<vmem>>, vector<1x16x256xf32>
    %116 = vector.shape_cast %115 : vector<1x16x256xf32> to vector<16x256xf32>
    %117 = arith.addf %114, %116 : vector<16x256xf32>
    %c0_43 = arith.constant 0 : index
    %c0_44 = arith.constant 0 : index
    %c0_45 = arith.constant 0 : index
    %118 = vector.load %arg8[%c0_43, %c0_44, %c0_45] : memref<1x16x256xf32, #tpu.memory_space<vmem>>, vector<1x16x256xf32>
    %119 = vector.shape_cast %118 : vector<1x16x256xf32> to vector<16x256xf32>
    %120 = vector.shape_cast %117 : vector<16x256xf32> to vector<1x16x256xf32>
    tpu.vector_store %arg8[%c0_43, %c0_44, %c0_45], %120 {strides = array<i32>} : memref<1x16x256xf32, #tpu.memory_space<vmem>>, vector<1x16x256xf32>,
    return
  }
  func.func @transform_0(%arg0: i32) -> (i32, i32, i32) {
    %c0_i32 = arith.constant 0 : i32
    %c0_i32_0 = arith.constant 0 : i32
    %c0_i32_1 = arith.constant 0 : i32
    return %arg0, %c0_i32, %c0_i32_0 : i32, i32, i32
  }
  func.func @transform_1(%arg0: i32) -> (i32, i32) {
    %c0_i32 = arith.constant 0 : i32
    %c0_i32_0 = arith.constant 0 : i32
    %c0_i32_1 = arith.constant 0 : i32
    return %c0_i32, %c0_i32_0 : i32, i32
  }
  func.func @transform_2(%arg0: i32) -> (i32, i32) {
    %c0_i32 = arith.constant 0 : i32
    %c0_i32_0 = arith.constant 0 : i32
    %c0_i32_1 = arith.constant 0 : i32
    return %c0_i32, %c0_i32_0 : i32, i32
  }
  func.func @transform_3(%arg0: i32) -> (i32, i32, i32) {
    %c0_i32 = arith.constant 0 : i32
    %c0_i32_0 = arith.constant 0 : i32
    %c0_i32_1 = arith.constant 0 : i32
    %c0_i32_2 = arith.constant 0 : i32
    return %c0_i32, %c0_i32_0, %c0_i32_1 : i32, i32, i32
  }
  func.func @transform_4(%arg0: i32) -> (i32, i32) {
    %c0_i32 = arith.constant 0 : i32
    %c0_i32_0 = arith.constant 0 : i32
    %c0_i32_1 = arith.constant 0 : i32
    return %c0_i32, %c0_i32_0 : i32, i32
  }
  func.func @transform_5(%arg0: i32) -> (i32, i32) {
    %c0_i32 = arith.constant 0 : i32
    %c0_i32_0 = arith.constant 0 : i32
    %c0_i32_1 = arith.constant 0 : i32
    return %c0_i32, %c0_i32_0 : i32, i32
  }
  func.func @transform_6(%arg0: i32) -> (i32, i32) {
    %c0_i32 = arith.constant 0 : i32
    %c0_i32_0 = arith.constant 0 : i32
    %c0_i32_1 = arith.constant 0 : i32
    return %c0_i32, %c0_i32_0 : i32, i32
  }
  func.func @transform_7(%arg0: i32) -> (i32, i32, i32) {
    %c0_i32 = arith.constant 0 : i32
    %c0_i32_0 = arith.constant 0 : i32
    %c0_i32_1 = arith.constant 0 : i32
    return %arg0, %c0_i32, %c0_i32_0 : i32, i32, i32
  }
}

</mosaic_0001>

<llo_original>
// kernel: tpu_custom_call.1
$region0: #{tpu_custom_call.1}
  #allocation0 [shape = 'u32[]', space=smem, size = 0x4, offset = 0x4, fixed_abs, tag = 'smem constant byte address 0x4 - core index']
  #allocation1 [shape = 'u32[144,128]{1,0:T(1,128)}', space=vmem, size = 0x12000, scoped, tag = 'internal scratch']
  %s0 = inlined_call_operand.vmem [shape: f32[2,16,256], index: 0, kind: input, shape index: {}]
  %s1 = inlined_call_operand.vmem [shape: f32[4,16], index: 1, kind: input, shape index: {}]
  %s2 = inlined_call_operand.vmem [shape: f32[4,1], index: 2, kind: input, shape index: {}]
  %s3 = inlined_call_operand.vmem [shape: f32[9,4,4], index: 3, kind: input, shape index: {}]
  %s4 = inlined_call_operand.vmem [shape: f32[4,1], index: 4, kind: input, shape index: {}]
  %s5 = inlined_call_operand.vmem [shape: f32[16,4], index: 5, kind: input, shape index: {}]
  %s6 = inlined_call_operand.vmem [shape: f32[16,1], index: 6, kind: input, shape index: {}]
  %s7 = inlined_call_operand.hbm [shape: f32[2,16,256], index: 7, kind: output, shape index: {}]
  %s8 = sld [smem:[#allocation0]]
  $region61: #{tpu_custom_call.1} parent=0
    _
  %s10 = ssub.s32 1, %s8
  %s11 = scalar_select 0, %s10, %s8
  $region1: #{tpu_custom_call.1} parent=0
    #allocation2 [shape = 'u8[32768]{0}', space=vmem, size = 0x8000, scoped, tag = 'output window, operand 0']
    #allocation3 [shape = 's32[2]{0}', space=sflag, size = 0x8, scoped, tag = 'scoped memory for tpu_custom_call.1']
    %12 = vsyncpa [#allocation3], 0
    %s13 = scalar_lea.sflag [#allocation3], 1
    %14 = vsyncpa %s13, 0
    loop: start=0, step=1, limit=4
    $region2: #{tpu_custom_call.1} parent=1 // loop_pre_header
      _
    $region3: #{tpu_custom_call.1} parent=1 // loop_header
      %s16 = sphi 0, %s20
      %p17 = scmp.ge.s32.totalorder %s16, 4
      %s26 = sphi 0, %s28
      %s29 = sphi 0, %s26
      %s30 = sphi 0, %s29
      %s46 = sphi 0, %s30
      %s50 = sphi 0, %s50
      %s52 = sphi 0, %s50
      %s53 = sphi 0, %s52
      %s67 = sphi 0, %s53
      %s71 = sphi 0, %s71
      %s73 = sphi 0, %s71
      %s74 = sphi 0, %s73
      %s88 = sphi 0, %s74
      %s92 = sphi 0, %s92
      %s94 = sphi 0, %s92
      %s95 = sphi 0, %s94
      %s109 = sphi 0, %s95
      %s113 = sphi 0, %s113
      %s115 = sphi 0, %s113
      %s116 = sphi 0, %s115
      %s130 = sphi 0, %s116
      %s134 = sphi 0, %s134
      %s136 = sphi 0, %s134
      %s137 = sphi 0, %s136
      %s151 = sphi 0, %s137
      %s155 = sphi 0, %s155
      %s157 = sphi 0, %s155
      %s158 = sphi 0, %s157
      %s172 = sphi 0, %s158
      %s178 = sphi 0, %s180
      %s181 = sphi 0, %s178
      %s182 = sphi 0, %s181
      %s198 = sphi 0, %s182
    $region4: #{tpu_custom_call.1} parent=1 // loop_header_branch
      %19 = sbr.rel (%p17) target = $region8
    $region5: #{tpu_custom_call.1} parent=1 // loop_body
      %s21 = ssub.s32 %s16, 1
      %s22 = ssub.s32 %s16, 2
      %s23 = sadd.s32 %s16, 1
      %s24 = ssub.s32 %s16, %s23
      %p25 = scmp.eq.s32.totalorder %s24, 0
      %s27 = sadd.s32 %s26, 1
      %s28 = scalar_select %p25, %s26, %s27
      %p31 = pneg %p25
      %p32 = scmp.eq.s32.totalorder %s16, 1
      %p33 = por %p31, %p32
      %p34 = scmp.ne.s32.totalorder %s26, %s29
      %p35 = scmp.eq.s32.totalorder %s16, 0
      %p36 = por %p34, %p35
      %p37 = scmp.ne.s32.totalorder %s26, %s29
      %p38 = scmp.eq.s32.totalorder %s21, 1
      %p39 = por %p37, %p38
      %p40 = scmp.ne.s32.totalorder %s29, %s30
      %p41 = scmp.eq.s32.totalorder %s21, 0
      %p42 = por %p40, %p41
      %p43 = scmp.ne.s32.totalorder %s29, %s30
      %p44 = scmp.eq.s32.totalorder %s22, 1
      %p45 = por %p43, %p44
      %p47 = scmp.ne.s32.totalorder %s30, %s46
      %p48 = scmp.eq.s32.totalorder %s22, 0
      %p49 = por %p47, %p48
      %s51 = sadd.s32 %s50, 1
      %p54 = scmp.eq.s32.totalorder %s16, 1
      %p55 = scmp.ne.s32.totalorder %s50, %s52
      %p56 = scmp.eq.s32.totalorder %s16, 0
      %p57 = por %p55, %p56
      %p58 = scmp.ne.s32.totalorder %s50, %s52
      %p59 = scmp.eq.s32.totalorder %s21, 1
      %p60 = por %p58, %p59
      %p61 = scmp.ne.s32.totalorder %s52, %s53
      %p62 = scmp.eq.s32.totalorder %s21, 0
      %p63 = por %p61, %p62
      %p64 = scmp.ne.s32.totalorder %s52, %s53
      %p65 = scmp.eq.s32.totalorder %s22, 1
      %p66 = por %p64, %p65
      %p68 = scmp.ne.s32.totalorder %s53, %s67
      %p69 = scmp.eq.s32.totalorder %s22, 0
      %p70 = por %p68, %p69
      %s72 = sadd.s32 %s71, 1
      %p75 = scmp.eq.s32.totalorder %s16, 1
      %p76 = scmp.ne.s32.totalorder %s71, %s73
      %p77 = scmp.eq.s32.totalorder %s16, 0
      %p78 = por %p76, %p77
      %p79 = scmp.ne.s32.totalorder %s71, %s73
      %p80 = scmp.eq.s32.totalorder %s21, 1
      %p81 = por %p79, %p80
      %p82 = scmp.ne.s32.totalorder %s73, %s74
      %p83 = scmp.eq.s32.totalorder %s21, 0
      %p84 = por %p82, %p83
      %p85 = scmp.ne.s32.totalorder %s73, %s74
      %p86 = scmp.eq.s32.totalorder %s22, 1
      %p87 = por %p85, %p86
      %p89 = scmp.ne.s32.totalorder %s74, %s88
      %p90 = scmp.eq.s32.totalorder %s22, 0
      %p91 = por %p89, %p90
      %s93 = sadd.s32 %s92, 1
      %p96 = scmp.eq.s32.totalorder %s16, 1
      %p97 = scmp.ne.s32.totalorder %s92, %s94
      %p98 = scmp.eq.s32.totalorder %s16, 0
      %p99 = por %p97, %p98
      %p100 = scmp.ne.s32.totalorder %s92, %s94
      %p101 = scmp.eq.s32.totalorder %s21, 1
      %p102 = por %p100, %p101
      %p103 = scmp.ne.s32.totalorder %s94, %s95
      %p104 = scmp.eq.s32.totalorder %s21, 0
      %p105 = por %p103, %p104
      %p106 = scmp.ne.s32.totalorder %s94, %s95
      %p107 = scmp.eq.s32.totalorder %s22, 1
      %p108 = por %p106, %p107
      %p110 = scmp.ne.s32.totalorder %s95, %s109
      %p111 = scmp.eq.s32.totalorder %s22, 0
      %p112 = por %p110, %p111
      %s114 = sadd.s32 %s113, 1
      %p117 = scmp.eq.s32.totalorder %s16, 1
      %p118 = scmp.ne.s32.totalorder %s113, %s115
      %p119 = scmp.eq.s32.totalorder %s16, 0
      %p120 = por %p118, %p119
      %p121 = scmp.ne.s32.totalorder %s113, %s115
      %p122 = scmp.eq.s32.totalorder %s21, 1
      %p123 = por %p121, %p122
      %p124 = scmp.ne.s32.totalorder %s115, %s116
      %p125 = scmp.eq.s32.totalorder %s21, 0
      %p126 = por %p124, %p125
      %p127 = scmp.ne.s32.totalorder %s115, %s116
      %p128 = scmp.eq.s32.totalorder %s22, 1
      %p129 = por %p127, %p128
      %p131 = scmp.ne.s32.totalorder %s116, %s130
      %p132 = scmp.eq.s32.totalorder %s22, 0
      %p133 = por %p131, %p132
      %s135 = sadd.s32 %s134, 1
      %p138 = scmp.eq.s32.totalorder %s16, 1
      %p139 = scmp.ne.s32.totalorder %s134, %s136
      %p140 = scmp.eq.s32.totalorder %s16, 0
      %p141 = por %p139, %p140
      %p142 = scmp.ne.s32.totalorder %s134, %s136
      %p143 = scmp.eq.s32.totalorder %s21, 1
      %p144 = por %p142, %p143
      %p145 = scmp.ne.s32.totalorder %s136, %s137
      %p146 = scmp.eq.s32.totalorder %s21, 0
      %p147 = por %p145, %p146
      %p148 = scmp.ne.s32.totalorder %s136, %s137
      %p149 = scmp.eq.s32.totalorder %s22, 1
      %p150 = por %p148, %p149
      %p152 = scmp.ne.s32.totalorder %s137, %s151
      %p153 = scmp.eq.s32.totalorder %s22, 0
      %p154 = por %p152, %p153
      %s156 = sadd.s32 %s155, 1
      %p159 = scmp.eq.s32.totalorder %s16, 1
      %p160 = scmp.ne.s32.totalorder %s155, %s157
      %p161 = scmp.eq.s32.totalorder %s16, 0
      %p162 = por %p160, %p161
      %p163 = scmp.ne.s32.totalorder %s155, %s157
      %p164 = scmp.eq.s32.totalorder %s21, 1
      %p165 = por %p163, %p164
      %p166 = scmp.ne.s32.totalorder %s157, %s158
      %p167 = scmp.eq.s32.totalorder %s21, 0
      %p168 = por %p166, %p167
      %p169 = scmp.ne.s32.totalorder %s157, %s158
      %p170 = scmp.eq.s32.totalorder %s22, 1
      %p171 = por %p169, %p170
      %p173 = scmp.ne.s32.totalorder %s158, %s172
      %p174 = scmp.eq.s32.totalorder %s22, 0
      %p175 = por %p173, %p174
      %s176 = ssub.s32 %s16, %s23
      %p177 = scmp.eq.s32.totalorder %s176, 0
      %s179 = sadd.s32 %s178, 1
      %s180 = scalar_select %p177, %s178, %s179
      %p183 = pneg %p177
      %p184 = scmp.eq.s32.totalorder %s16, 1
      %p185 = por %p183, %p184
      %p186 = scmp.ne.s32.totalorder %s178, %s181
      %p187 = scmp.eq.s32.totalorder %s16, 0
      %p188 = por %p186, %p187
      %p189 = scmp.ne.s32.totalorder %s178, %s181
      %p190 = scmp.eq.s32.totalorder %s21, 1
      %p191 = por %p189, %p190
      %p192 = scmp.ne.s32.totalorder %s181, %s182
      %p193 = scmp.eq.s32.totalorder %s21, 0
      %p194 = por %p192, %p193
      %p195 = scmp.ne.s32.totalorder %s181, %s182
      %p196 = scmp.eq.s32.totalorder %s22, 1
      %p197 = por %p195, %p196
      %p199 = scmp.ne.s32.totalorder %s182, %s198
      %p200 = scmp.eq.s32.totalorder %s22, 0
      %p201 = por %p199, %p200
      %p202 = scmp.le.s32.totalorder 1, %s16
      %p203 = scmp.lt.s32.totalorder %s16, 3
      %p204 = pnand %p202, %p203
      %p205 = pneg %p204
      // Predicated region
      $region9: #{tpu_custom_call.1} parent=5 // pred_check
        _
      $region10: #{tpu_custom_call.1} parent=5 // pred_check_branch
        %207 = sbr.rel (%p204) target = $region12
      $region11: #{tpu_custom_call.1} parent=5 // pred_region
        %s208 = ssub.s32 %s16, 1
        // Predicated region
        $region13: #{tpu_custom_call.1} parent=11 // pred_check
          %p209 = pneg %p63
        $region14: #{tpu_custom_call.1} parent=11 // pred_check_branch
          %211 = sbr.rel (%p209) target = $region16
        $region15: #{tpu_custom_call.1} parent=11 // pred_region
          _
        $region16: #{tpu_custom_call.1} parent=11 // pred_fallthru
          _
        // Predicated region
        $region17: #{tpu_custom_call.1} parent=11 // pred_check
          %p212 = pneg %p84
        $region18: #{tpu_custom_call.1} parent=11 // pred_check_branch
          %214 = sbr.rel (%p212) target = $region20
        $region19: #{tpu_custom_call.1} parent=11 // pred_region
          _
        $region20: #{tpu_custom_call.1} parent=11 // pred_fallthru
          _
        // Predicated region
        $region21: #{tpu_custom_call.1} parent=11 // pred_check
          %p215 = pneg %p105
        $region22: #{tpu_custom_call.1} parent=11 // pred_check_branch
          %217 = sbr.rel (%p215) target = $region24
        $region23: #{tpu_custom_call.1} parent=11 // pred_region
          _
        $region24: #{tpu_custom_call.1} parent=11 // pred_fallthru
          _
        // Predicated region
        $region25: #{tpu_custom_call.1} parent=11 // pred_check
          %p218 = pneg %p126
        $region26: #{tpu_custom_call.1} parent=11 // pred_check_branch
          %220 = sbr.rel (%p218) target = $region28
        $region27: #{tpu_custom_call.1} parent=11 // pred_region
          _
        $region28: #{tpu_custom_call.1} parent=11 // pred_fallthru
          _
        // Predicated region
        $region29: #{tpu_custom_call.1} parent=11 // pred_check
          %p221 = pneg %p147
        $region30: #{tpu_custom_call.1} parent=11 // pred_check_branch
          %223 = sbr.rel (%p221) target = $region32
        $region31: #{tpu_custom_call.1} parent=11 // pred_region
          _
        $region32: #{tpu_custom_call.1} parent=11 // pred_fallthru
          _
        // Predicated region
        $region33: #{tpu_custom_call.1} parent=11 // pred_check
          %p224 = pneg %p168
        $region34: #{tpu_custom_call.1} parent=11 // pred_check_branch
          %226 = sbr.rel (%p224) target = $region36
        $region35: #{tpu_custom_call.1} parent=11 // pred_region
          _
        $region36: #{tpu_custom_call.1} parent=11 // pred_fallthru
          _
      $region12: #{tpu_custom_call.1} parent=5 // pred_fallthru
        _
      %p227 = scmp.lt.s32.totalorder %s16, 2
      // Predicated region
      $region37: #{tpu_custom_call.1} parent=5 // pred_check
        %p228 = pneg %p227
      $region38: #{tpu_custom_call.1} parent=5 // pred_check_branch
        %230 = sbr.rel (%p228) target = $region40
      $region39: #{tpu_custom_call.1} parent=5 // pred_region
        // Predicated region
        $region41: #{tpu_custom_call.1} parent=39 // pred_check
          %p231 = pneg %p36
        $region42: #{tpu_custom_call.1} parent=39 // pred_check_branch
          %233 = sbr.rel (%p231) target = $region44
        $region43: #{tpu_custom_call.1} parent=39 // pred_region
          %p234 = scmp.lt.s32.totalorder %s16, 1
          %s235 = scalar_select %p234, %s16, 1
          %s236 = smul.addr %s235, 4
          %s237 = smul.addr %s236, 8
          %s238 = scalar_lea.vmem %s0, %s237
        $region44: #{tpu_custom_call.1} parent=39 // pred_fallthru
          _
      $region40: #{tpu_custom_call.1} parent=5 // pred_fallthru
        _
      %p239 = scmp.le.s32.totalorder 1, %s16
      %p240 = scmp.lt.s32.totalorder %s16, 3
      %p241 = pnand %p239, %p240
      %p242 = pneg %p241
      // Predicated region
      $region45: #{tpu_custom_call.1} parent=5 // pred_check
        _
      $region46: #{tpu_custom_call.1} parent=5 // pred_check_branch
        %244 = sbr.rel (%p241) target = $region48
      $region47: #{tpu_custom_call.1} parent=5 // pred_region
        %s245 = ssub.s32 %s16, 1
        %p246 = scmp.lt.s32.totalorder %s21, 1
        %s247 = scalar_select %p246, %s21, 1
        %s248 = smul.addr %s247, 4
        %s249 = smul.addr %s248, 8
        %s250 = scalar_lea.vmem %s0, %s249
        %p251 = pneg %p42
        %p252 = pneg %p39
        %p253 = pneg %p63
        %p254 = pneg %p60
        %p255 = pneg %p84
        %p256 = pneg %p81
        %p257 = pneg %p105
        %p258 = pneg %p102
        %p259 = pneg %p126
        %p260 = pneg %p123
        %p261 = pneg %p147
        %p262 = pneg %p144
        %p263 = pneg %p168
        %p264 = pneg %p165
        %p265 = pneg %p194
        %p266 = pneg %p191
        %s267 = sand.u32 %s181, 1
        %s268 = scalar_lea.sflag [#allocation3], %s267
        %s269 = sand.u32 %s181, 1
        %s270 = smul.addr %s269, 32
        %s271 = scalar_lea.vmem [#allocation2], %s270
        %p272 = scmp.lt.s32.totalorder %s21, 1
        %s273 = scalar_select %p272, %s21, 1
        %s274 = smul.addr %s273, 4
        %s275 = smul.addr %s274, 8
        %s276 = scalar_lea.vmem %s0, %s275
        %v277 = vld [vmem:[%s1] sm:$0xf]
        %v278 = vld [vmem:[%s276] sm:$0xff]
        %v279 = vld [vmem:[%s276 + $0x8] sm:$0xff]
        %v280 = vld [vmem:[%s276 + $0x10] sm:$0xff]
        %v281 = vld [vmem:[%s276 + $0x18] sm:$0xff]
        %v282 = vld [vmem:[%s2] sm:$0xf]
        %284 = vset.pattern.permute.xlu0 0
        %285 = vperm.xlu0 %284, %v282
        %v286 = vpop.permute.xlu0 %285
        %vm288 = vcmask 130048
        %v290 = vsel %vm288, %v277, 0
        %292 = vmatprep.subr.mxu0 %v279
        %293 = vmatpush1.msra.mxu0 %v278
        %294 = vmatprep.subr.mxu0 %v281
        %295 = vmatpush1.msra.mxu0 %v280
        %296 = vmatprep.subr.mxu0 0.0
        %297 = vmatpush1.msra.mxu0 0.0
        %298 = vmatprep.subr.mxu0 0.0
        %299 = vmatpush1.msra.mxu0 0.0
        %300 = vmatprep.subr.mxu0 0.0
        %301 = vmatpush1.msra.mxu0 0.0
        %302 = vmatprep.subr.mxu0 0.0
        %303 = vmatpush1.msra.mxu0 0.0
        %304 = vmatprep.subr.mxu0 0.0
        %305 = vmatpush1.msra.mxu0 0.0
        %306 = vmatprep.subr.mxu0 0.0
        %307 = vmatpush1.msra.mxu0 0.0
        %308 = vmatprep.subr.mxu0 0.0
        %309 = vmatpush1.msra.mxu0 0.0
        %310 = vmatprep.subr.mxu0 0.0
        %311 = vmatpush1.msra.mxu0 0.0
        %312 = vmatprep.subr.mxu0 0.0
        %313 = vmatpush1.msra.mxu0 0.0
        %314 = vmatprep.subr.mxu0 0.0
        %315 = vmatpush1.msra.mxu0 0.0
        %316 = vmatprep.subr.mxu0 0.0
        %317 = vmatpush1.msra.mxu0 0.0
        %318 = vmatprep.subr.mxu0 0.0
        %319 = vmatpush1.msra.mxu0 0.0
        %320 = vmatprep.subr.mxu0 0.0
        %321 = vmatpush1.msra.mxu0 0.0
        %322 = vmatprep.subr.mxu0 0.0
        %323 = vmatpush1.msra.mxu0 0.0
        %324 = vmatprep.subr.mxu0 0.0
        %325 = vmatpush1.msra.mxu0 0.0
        %326 = vmatprep.subr.mxu0 0.0
        %327 = vmatpush1.msra.mxu0 0.0
        %328 = vmatprep.subr.mxu0 0.0
        %329 = vmatpush1.msra.mxu0 0.0
        %330 = vmatprep.subr.mxu0 0.0
        %331 = vmatpush1.msra.mxu0 0.0
        %332 = vmatprep.subr.mxu0 0.0
        %333 = vmatpush1.msra.mxu0 0.0
        %334 = vmatprep.subr.mxu0 0.0
        %335 = vmatpush1.msra.mxu0 0.0
        %336 = vmatprep.subr.mxu0 0.0
        %337 = vmatpush1.msra.mxu0 0.0
        %338 = vmatprep.subr.mxu0 0.0
        %339 = vmatpush1.msra.mxu0 0.0
        %340 = vmatprep.subr.mxu0 0.0
        %341 = vmatpush1.msra.mxu0 0.0
        %342 = vmatprep.subr.mxu0 0.0
        %343 = vmatpush1.msra.mxu0 0.0
        %344 = vmatprep.subr.mxu0 0.0
        %345 = vmatpush1.msra.mxu0 0.0
        %346 = vmatprep.subr.mxu0 0.0
        %347 = vmatpush1.msra.mxu0 0.0
        %348 = vmatprep.subr.mxu0 0.0
        %349 = vmatpush1.msra.mxu0 0.0
        %350 = vmatprep.subr.mxu0 0.0
        %351 = vmatpush1.msra.mxu0 0.0
        %352 = vmatprep.subr.mxu0 0.0
        %353 = vmatpush1.msra.mxu0 0.0
        %354 = vmatprep.subr.mxu0 0.0
        %355 = vmatpush1.msra.mxu0 0.0
        %356 = vmatprep.mubr.f32.mxu0 0.0
        %357 = vmatmul.mubr.f32.gmra.mrb[0].mxu0 %v290
        %v358 = vpop.f32.mrb[0].mxu0
        %v359 = vadd.f32 %v286, %v358
        %v360 = vpop.f32.mrb[0].mxu0
        %v361 = vadd.f32 %v286, %v360
        %362 = vdwg.mxu0
        %v363 = vmax.f32 %v359, 0.0
        %v364 = vmax.f32 %v361, 0.0
        %367 = vrot.lane.b32.xlu0 %v363, 17
        %v368 = vpop.permute.xlu0 %367
        %369 = vrot.lane.b32.xlu0 %v364, 17
        %v370 = vpop.permute.xlu0 %369
        %vm371 = vcmask 138240
        %v372 = vsel %vm371, %v368, %v370
        %v376 = vsel %vm371, 0.0, %v368
        %v377 = vsel %vm371, %v370, 0.0
        %v378 = vlaneseq
        %v379 = vand.u32 %v378, 127
        %v380 = vadd.s32 %v379, 128
        %vm381 = vcmp.lt.s32.totalorder %v379, 0
        %v382 = vsub.s32 0, %v379
        %v383 = vsel %vm381, %v382, %v379
        %v384 = vshrl.u32 %v383, 4
        %v385 = vand.u32 %v383, 15
        %v386 = vsub.s32 0, %v385
        %v387 = vsel %vm381, %v386, %v385
        %vm388 = vcmp.lt.s32.totalorder %v380, 0
        %v389 = vsub.s32 0, %v380
        %v390 = vsel %vm388, %v389, %v380
        %v391 = vshrl.u32 %v390, 4
        %v392 = vand.u32 %v390, 15
        %v393 = vsub.s32 0, %v392
        %v394 = vsel %vm388, %v393, %v392
        %vm395 = vcmp.ne.s32.totalorder %v387, 0
        %vm396 = vcmp.ne.s32.totalorder %v394, 0
        %vm397 = vcmp.lt.s32.totalorder %v387, 0
        %vm398 = vcmp.lt.s32.totalorder %v394, 0
        %vm399 = vmand %vm397, %vm395
        %vm400 = vmand %vm398, %vm396
        %v401 = vadd.s32 %v387, 16
        %v402 = vadd.s32 %v394, 16
        %v403 = vsel %vm399, %v401, %v387
        %v404 = vsel %vm400, %v402, %v394
        %vm405 = vcmp.ge.s32.totalorder %v403, 1
        %vm406 = vcmp.ge.s32.totalorder %v404, 1
        %vm407 = vcmp.le.s32.totalorder %v403, 14
        %vm408 = vcmp.le.s32.totalorder %v404, 14
        %v409 = vld [vmem:[%s3] sm:$0xf]
        %v410 = vld [vmem:[%s3 + $0x4] sm:$0xf]
        %v411 = vld [vmem:[%s3 + $0x8] sm:$0xf]
        %v412 = vld [vmem:[%s3 + $0xc] sm:$0xf]
        %v413 = vld [vmem:[%s3 + $0x10] sm:$0xf]
        %v414 = vld [vmem:[%s3 + $0x14] sm:$0xf]
        %v415 = vld [vmem:[%s3 + $0x18] sm:$0xf]
        %v416 = vld [vmem:[%s3 + $0x1c] sm:$0xf]
        %v417 = vld [vmem:[%s3 + $0x20] sm:$0xf]
        %v418 = vsel %vm405, 1, 0
        %v419 = vsel %vm406, 1, 0
        %vm420 = vcmp.eq.s32.totalorder %v418, 1
        %vm421 = vcmp.eq.s32.totalorder %v419, 1
        %v422 = vsel %vm420, %v376, 0.0
        %v423 = vsel %vm421, %v372, 0.0
        %426 = vrot.lane.b32.xlu0 %v376, 127
        %v427 = vpop.permute.xlu0 %426
        %428 = vrot.lane.b32.xlu0 %v372, 127
        %v429 = vpop.permute.xlu0 %428
        %430 = vrot.lane.b32.xlu0 %v377, 127
        %v431 = vpop.permute.xlu0 %430
        %vm432 = vcmask 1039360
        %v433 = vsel %vm432, %v427, %v429
        %v434 = vsel %vm432, %v429, %v431
        %vm435 = vcmask 31744
        %v437 = vsel %vm435, %v410, 0
        %vm439 = vcmask 1043456
        %v440 = vsel %vm439, %v433, 0
        %v442 = vsel %vm439, %v434, 0
        %444 = vmatprep.subr.mxu0 %v442
        %445 = vmatpush1.msra.mxu0 %v440
        %446 = vmatprep.subr.mxu0 0.0
        %447 = vmatpush1.msra.mxu0 0.0
        %448 = vmatprep.subr.mxu0 0.0
        %449 = vmatpush1.msra.mxu0 0.0
        %450 = vmatprep.subr.mxu0 0.0
        %451 = vmatpush1.msra.mxu0 0.0
        %452 = vmatprep.subr.mxu0 0.0
        %453 = vmatpush1.msra.mxu0 0.0
        %454 = vmatprep.subr.mxu0 0.0
        %455 = vmatpush1.msra.mxu0 0.0
        %456 = vmatprep.subr.mxu0 0.0
        %457 = vmatpush1.msra.mxu0 0.0
        %458 = vmatprep.subr.mxu0 0.0
        %459 = vmatpush1.msra.mxu0 0.0
        %460 = vmatprep.subr.mxu0 0.0
        %461 = vmatpush1.msra.mxu0 0.0
        %462 = vmatprep.subr.mxu0 0.0
        %463 = vmatpush1.msra.mxu0 0.0
        %464 = vmatprep.subr.mxu0 0.0
        %465 = vmatpush1.msra.mxu0 0.0
        %466 = vmatprep.subr.mxu0 0.0
        %467 = vmatpush1.msra.mxu0 0.0
        %468 = vmatprep.subr.mxu0 0.0
        %469 = vmatpush1.msra.mxu0 0.0
        %470 = vmatprep.subr.mxu0 0.0
        %471 = vmatpush1.msra.mxu0 0.0
        %472 = vmatprep.subr.mxu0 0.0
        %473 = vmatpush1.msra.mxu0 0.0
        %474 = vmatprep.subr.mxu0 0.0
        %475 = vmatpush1.msra.mxu0 0.0
        %476 = vmatprep.subr.mxu0 0.0
        %477 = vmatpush1.msra.mxu0 0.0
        %478 = vmatprep.subr.mxu0 0.0
        %479 = vmatpush1.msra.mxu0 0.0
        %480 = vmatprep.subr.mxu0 0.0
        %481 = vmatpush1.msra.mxu0 0.0
        %482 = vmatprep.subr.mxu0 0.0
        %483 = vmatpush1.msra.mxu0 0.0
        %484 = vmatprep.subr.mxu0 0.0
        %485 = vmatpush1.msra.mxu0 0.0
        %486 = vmatprep.subr.mxu0 0.0
        %487 = vmatpush1.msra.mxu0 0.0
        %488 = vmatprep.subr.mxu0 0.0
        %489 = vmatpush1.msra.mxu0 0.0
        %490 = vmatprep.subr.mxu0 0.0
        %491 = vmatpush1.msra.mxu0 0.0
        %492 = vmatprep.subr.mxu0 0.0
        %493 = vmatpush1.msra.mxu0 0.0
        %494 = vmatprep.subr.mxu0 0.0
        %495 = vmatpush1.msra.mxu0 0.0
        %496 = vmatprep.subr.mxu0 0.0
        %497 = vmatpush1.msra.mxu0 0.0
        %498 = vmatprep.subr.mxu0 0.0
        %499 = vmatpush1.msra.mxu0 0.0
        %500 = vmatprep.subr.mxu0 0.0
        %501 = vmatpush1.msra.mxu0 0.0
        %502 = vmatprep.subr.mxu0 0.0
        %503 = vmatpush1.msra.mxu0 0.0
        %504 = vmatprep.subr.mxu0 0.0
        %505 = vmatpush1.msra.mxu0 0.0
        %506 = vmatprep.subr.mxu0 0.0
        %507 = vmatpush1.msra.mxu0 0.0
        %508 = vmatprep.mubr.f32.mxu0 0.0
        %509 = vmatmul.mubr.f32.gmra.mrb[0].mxu0 %v437
        %v510 = vpop.f32.mrb[0].mxu0
        %v511 = vadd.f32 0.0, %v510
        %v512 = vpop.f32.mrb[0].mxu0
        %v513 = vadd.f32 0.0, %v512
        %514 = vdwg.mxu0
        %v516 = vsel %vm435, %v409, 0
        %v519 = vsel %vm439, %v422, 0
        %v522 = vsel %vm439, %v423, 0
        %524 = vmatprep.subr.mxu0 %v522
        %525 = vmatpush1.msra.mxu0 %v519
        %526 = vmatprep.subr.mxu0 0.0
        %527 = vmatpush1.msra.mxu0 0.0
        %528 = vmatprep.subr.mxu0 0.0
        %529 = vmatpush1.msra.mxu0 0.0
        %530 = vmatprep.subr.mxu0 0.0
        %531 = vmatpush1.msra.mxu0 0.0
        %532 = vmatprep.subr.mxu0 0.0
        %533 = vmatpush1.msra.mxu0 0.0
        %534 = vmatprep.subr.mxu0 0.0
        %535 = vmatpush1.msra.mxu0 0.0
        %536 = vmatprep.subr.mxu0 0.0
        %537 = vmatpush1.msra.mxu0 0.0
        %538 = vmatprep.subr.mxu0 0.0
        %539 = vmatpush1.msra.mxu0 0.0
        %540 = vmatprep.subr.mxu0 0.0
        %541 = vmatpush1.msra.mxu0 0.0
        %542 = vmatprep.subr.mxu0 0.0
        %543 = vmatpush1.msra.mxu0 0.0
        %544 = vmatprep.subr.mxu0 0.0
        %545 = vmatpush1.msra.mxu0 0.0
        %546 = vmatprep.subr.mxu0 0.0
        %547 = vmatpush1.msra.mxu0 0.0
        %548 = vmatprep.subr.mxu0 0.0
        %549 = vmatpush1.msra.mxu0 0.0
        %550 = vmatprep.subr.mxu0 0.0
        %551 = vmatpush1.msra.mxu0 0.0
        %552 = vmatprep.subr.mxu0 0.0
        %553 = vmatpush1.msra.mxu0 0.0
        %554 = vmatprep.subr.mxu0 0.0
        %555 = vmatpush1.msra.mxu0 0.0
        %556 = vmatprep.subr.mxu0 0.0
        %557 = vmatpush1.msra.mxu0 0.0
        %558 = vmatprep.subr.mxu0 0.0
        %559 = vmatpush1.msra.mxu0 0.0
        %560 = vmatprep.subr.mxu0 0.0
        %561 = vmatpush1.msra.mxu0 0.0
        %562 = vmatprep.subr.mxu0 0.0
        %563 = vmatpush1.msra.mxu0 0.0
        %564 = vmatprep.subr.mxu0 0.0
        %565 = vmatpush1.msra.mxu0 0.0
        %566 = vmatprep.subr.mxu0 0.0
        %567 = vmatpush1.msra.mxu0 0.0
        %568 = vmatprep.subr.mxu0 0.0
        %569 = vmatpush1.msra.mxu0 0.0
        %570 = vmatprep.subr.mxu0 0.0
        %571 = vmatpush1.msra.mxu0 0.0
        %572 = vmatprep.subr.mxu0 0.0
        %573 = vmatpush1.msra.mxu0 0.0
        %574 = vmatprep.subr.mxu0 0.0
        %575 = vmatpush1.msra.mxu0 0.0
        %576 = vmatprep.subr.mxu0 0.0
        %577 = vmatpush1.msra.mxu0 0.0
        %578 = vmatprep.subr.mxu0 0.0
        %579 = vmatpush1.msra.mxu0 0.0
        %580 = vmatprep.subr.mxu0 0.0
        %581 = vmatpush1.msra.mxu0 0.0
        %582 = vmatprep.subr.mxu0 0.0
        %583 = vmatpush1.msra.mxu0 0.0
        %584 = vmatprep.subr.mxu0 0.0
        %585 = vmatpush1.msra.mxu0 0.0
        %586 = vmatprep.subr.mxu0 0.0
        %587 = vmatpush1.msra.mxu0 0.0
        %588 = vmatprep.mubr.f32.mxu0 0.0
        %589 = vmatmul.mubr.f32.gmra.mrb[0].mxu0 %v516
        %v590 = vpop.f32.mrb[0].mxu0
        %v591 = vadd.f32 %v511, %v590
        %v592 = vpop.f32.mrb[0].mxu0
        %v593 = vadd.f32 %v513, %v592
        %594 = vdwg.mxu0
        %v595 = vsel %vm407, 1, 0
        %v596 = vsel %vm408, 1, 0
        %vm597 = vcmp.eq.s32.totalorder %v595, 1
        %vm598 = vcmp.eq.s32.totalorder %v596, 1
        %599 = vrot.lane.b32.xlu0 %v376, 126
        %v600 = vpop.permute.xlu0 %599
        %601 = vrot.lane.b32.xlu0 %v372, 126
        %v602 = vpop.permute.xlu0 %601
        %603 = vrot.lane.b32.xlu0 %v377, 126
        %v604 = vpop.permute.xlu0 %603
        %vm605 = vcmask 1031168
        %v606 = vsel %vm605, %v600, %v602
        %v607 = vsel %vm605, %v602, %v604
        %v610 = vsel %vm597, %v606, 0.0
        %v611 = vsel %vm598, %v607, 0.0
        %v613 = vsel %vm435, %v411, 0
        %v616 = vsel %vm439, %v610, 0
        %v619 = vsel %vm439, %v611, 0
        %621 = vmatprep.subr.mxu0 %v619
        %622 = vmatpush1.msra.mxu0 %v616
        %623 = vmatprep.subr.mxu0 0.0
        %624 = vmatpush1.msra.mxu0 0.0
        %625 = vmatprep.subr.mxu0 0.0
        %626 = vmatpush1.msra.mxu0 0.0
        %627 = vmatprep.subr.mxu0 0.0
        %628 = vmatpush1.msra.mxu0 0.0
        %629 = vmatprep.subr.mxu0 0.0
        %630 = vmatpush1.msra.mxu0 0.0
        %631 = vmatprep.subr.mxu0 0.0
        %632 = vmatpush1.msra.mxu0 0.0
        %633 = vmatprep.subr.mxu0 0.0
        %634 = vmatpush1.msra.mxu0 0.0
        %635 = vmatprep.subr.mxu0 0.0
        %636 = vmatpush1.msra.mxu0 0.0
        %637 = vmatprep.subr.mxu0 0.0
        %638 = vmatpush1.msra.mxu0 0.0
        %639 = vmatprep.subr.mxu0 0.0
        %640 = vmatpush1.msra.mxu0 0.0
        %641 = vmatprep.subr.mxu0 0.0
        %642 = vmatpush1.msra.mxu0 0.0
        %643 = vmatprep.subr.mxu0 0.0
        %644 = vmatpush1.msra.mxu0 0.0
        %645 = vmatprep.subr.mxu0 0.0
        %646 = vmatpush1.msra.mxu0 0.0
        %647 = vmatprep.subr.mxu0 0.0
        %648 = vmatpush1.msra.mxu0 0.0
        %649 = vmatprep.subr.mxu0 0.0
        %650 = vmatpush1.msra.mxu0 0.0
        %651 = vmatprep.subr.mxu0 0.0
        %652 = vmatpush1.msra.mxu0 0.0
        %653 = vmatprep.subr.mxu0 0.0
        %654 = vmatpush1.msra.mxu0 0.0
        %655 = vmatprep.subr.mxu0 0.0
        %656 = vmatpush1.msra.mxu0 0.0
        %657 = vmatprep.subr.mxu0 0.0
        %658 = vmatpush1.msra.mxu0 0.0
        %659 = vmatprep.subr.mxu0 0.0
        %660 = vmatpush1.msra.mxu0 0.0
        %661 = vmatprep.subr.mxu0 0.0
        %662 = vmatpush1.msra.mxu0 0.0
        %663 = vmatprep.subr.mxu0 0.0
        %664 = vmatpush1.msra.mxu0 0.0
        %665 = vmatprep.subr.mxu0 0.0
        %666 = vmatpush1.msra.mxu0 0.0
        %667 = vmatprep.subr.mxu0 0.0
        %668 = vmatpush1.msra.mxu0 0.0
        %669 = vmatprep.subr.mxu0 0.0
        %670 = vmatpush1.msra.mxu0 0.0
        %671 = vmatprep.subr.mxu0 0.0
        %672 = vmatpush1.msra.mxu0 0.0
        %673 = vmatprep.subr.mxu0 0.0
        %674 = vmatpush1.msra.mxu0 0.0
        %675 = vmatprep.subr.mxu0 0.0
        %676 = vmatpush1.msra.mxu0 0.0
        %677 = vmatprep.subr.mxu0 0.0
        %678 = vmatpush1.msra.mxu0 0.0
        %679 = vmatprep.subr.mxu0 0.0
        %680 = vmatpush1.msra.mxu0 0.0
        %681 = vmatprep.subr.mxu0 0.0
        %682 = vmatpush1.msra.mxu0 0.0
        %683 = vmatprep.subr.mxu0 0.0
        %684 = vmatpush1.msra.mxu0 0.0
        %685 = vmatprep.mubr.f32.mxu0 0.0
        %686 = vmatmul.mubr.f32.gmra.mrb[0].mxu0 %v613
        %v687 = vpop.f32.mrb[0].mxu0
        %v688 = vadd.f32 0.0, %v687
        %v689 = vpop.f32.mrb[0].mxu0
        %v690 = vadd.f32 0.0, %v689
        %691 = vdwg.mxu0
        %v692 = vadd.f32 %v591, %v688
        %v693 = vadd.f32 %v593, %v690
        %694 = vrot.lane.b32.xlu0 %v376, 112
        %v695 = vpop.permute.xlu0 %694
        %696 = vrot.lane.b32.xlu0 %v372, 112
        %v697 = vpop.permute.xlu0 %696
        %698 = vrot.lane.b32.xlu0 %v377, 112
        %v699 = vpop.permute.xlu0 %698
        %vm700 = vcmask 916480
        %v701 = vsel %vm700, %v695, %v697
        %v702 = vsel %vm700, %v697, %v699
        %v705 = vsel %vm420, %v701, 0.0
        %v706 = vsel %vm421, %v702, 0.0
        %v708 = vsel %vm435, %v412, 0
        %v711 = vsel %vm439, %v705, 0
        %v714 = vsel %vm439, %v706, 0
        %716 = vmatprep.subr.mxu0 %v714
        %717 = vmatpush1.msra.mxu0 %v711
        %718 = vmatprep.subr.mxu0 0.0
        %719 = vmatpush1.msra.mxu0 0.0
        %720 = vmatprep.subr.mxu0 0.0
        %721 = vmatpush1.msra.mxu0 0.0
        %722 = vmatprep.subr.mxu0 0.0
        %723 = vmatpush1.msra.mxu0 0.0
        %724 = vmatprep.subr.mxu0 0.0
        %725 = vmatpush1.msra.mxu0 0.0
        %726 = vmatprep.subr.mxu0 0.0
        %727 = vmatpush1.msra.mxu0 0.0
        %728 = vmatprep.subr.mxu0 0.0
        %729 = vmatpush1.msra.mxu0 0.0
        %730 = vmatprep.subr.mxu0 0.0
        %731 = vmatpush1.msra.mxu0 0.0
        %732 = vmatprep.subr.mxu0 0.0
        %733 = vmatpush1.msra.mxu0 0.0
        %734 = vmatprep.subr.mxu0 0.0
        %735 = vmatpush1.msra.mxu0 0.0
        %736 = vmatprep.subr.mxu0 0.0
        %737 = vmatpush1.msra.mxu0 0.0
        %738 = vmatprep.subr.mxu0 0.0
        %739 = vmatpush1.msra.mxu0 0.0
        %740 = vmatprep.subr.mxu0 0.0
        %741 = vmatpush1.msra.mxu0 0.0
        %742 = vmatprep.subr.mxu0 0.0
        %743 = vmatpush1.msra.mxu0 0.0
        %744 = vmatprep.subr.mxu0 0.0
        %745 = vmatpush1.msra.mxu0 0.0
        %746 = vmatprep.subr.mxu0 0.0
        %747 = vmatpush1.msra.mxu0 0.0
        %748 = vmatprep.subr.mxu0 0.0
        %749 = vmatpush1.msra.mxu0 0.0
        %750 = vmatprep.subr.mxu0 0.0
        %751 = vmatpush1.msra.mxu0 0.0
        %752 = vmatprep.subr.mxu0 0.0
        %753 = vmatpush1.msra.mxu0 0.0
        %754 = vmatprep.subr.mxu0 0.0
        %755 = vmatpush1.msra.mxu0 0.0
        %756 = vmatprep.subr.mxu0 0.0
        %757 = vmatpush1.msra.mxu0 0.0
        %758 = vmatprep.subr.mxu0 0.0
        %759 = vmatpush1.msra.mxu0 0.0
        %760 = vmatprep.subr.mxu0 0.0
        %761 = vmatpush1.msra.mxu0 0.0
        %762 = vmatprep.subr.mxu0 0.0
        %763 = vmatpush1.msra.mxu0 0.0
        %764 = vmatprep.subr.mxu0 0.0
        %765 = vmatpush1.msra.mxu0 0.0
        %766 = vmatprep.subr.mxu0 0.0
        %767 = vmatpush1.msra.mxu0 0.0
        %768 = vmatprep.subr.mxu0 0.0
        %769 = vmatpush1.msra.mxu0 0.0
        %770 = vmatprep.subr.mxu0 0.0
        %771 = vmatpush1.msra.mxu0 0.0
        %772 = vmatprep.subr.mxu0 0.0
        %773 = vmatpush1.msra.mxu0 0.0
        %774 = vmatprep.subr.mxu0 0.0
        %775 = vmatpush1.msra.mxu0 0.0
        %776 = vmatprep.subr.mxu0 0.0
        %777 = vmatpush1.msra.mxu0 0.0
        %778 = vmatprep.subr.mxu0 0.0
        %779 = vmatpush1.msra.mxu0 0.0
        %780 = vmatprep.mubr.f32.mxu0 0.0
        %781 = vmatmul.mubr.f32.gmra.mrb[0].mxu0 %v708
        %v782 = vpop.f32.mrb[0].mxu0
        %v783 = vadd.f32 0.0, %v782
        %v784 = vpop.f32.mrb[0].mxu0
        %v785 = vadd.f32 0.0, %v784
        %786 = vdwg.mxu0
        %v787 = vadd.f32 %v692, %v783
        %v788 = vadd.f32 %v693, %v785
        %789 = vrot.lane.b32.xlu0 %v376, 111
        %v790 = vpop.permute.xlu0 %789
        %791 = vrot.lane.b32.xlu0 %v372, 111
        %v792 = vpop.permute.xlu0 %791
        %793 = vrot.lane.b32.xlu0 %v377, 111
        %v794 = vpop.permute.xlu0 %793
        %vm795 = vcmask 908288
        %v796 = vsel %vm795, %v790, %v792
        %v797 = vsel %vm795, %v792, %v794
        %v799 = vsel %vm435, %v413, 0
        %v801 = vsel %vm439, %v796, 0
        %v803 = vsel %vm439, %v797, 0
        %805 = vmatprep.subr.mxu0 %v803
        %806 = vmatpush1.msra.mxu0 %v801
        %807 = vmatprep.subr.mxu0 0.0
        %808 = vmatpush1.msra.mxu0 0.0
        %809 = vmatprep.subr.mxu0 0.0
        %810 = vmatpush1.msra.mxu0 0.0
        %811 = vmatprep.subr.mxu0 0.0
        %812 = vmatpush1.msra.mxu0 0.0
        %813 = vmatprep.subr.mxu0 0.0
        %814 = vmatpush1.msra.mxu0 0.0
        %815 = vmatprep.subr.mxu0 0.0
        %816 = vmatpush1.msra.mxu0 0.0
        %817 = vmatprep.subr.mxu0 0.0
        %818 = vmatpush1.msra.mxu0 0.0
        %819 = vmatprep.subr.mxu0 0.0
        %820 = vmatpush1.msra.mxu0 0.0
        %821 = vmatprep.subr.mxu0 0.0
        %822 = vmatpush1.msra.mxu0 0.0
        %823 = vmatprep.subr.mxu0 0.0
        %824 = vmatpush1.msra.mxu0 0.0
        %825 = vmatprep.subr.mxu0 0.0
        %826 = vmatpush1.msra.mxu0 0.0
        %827 = vmatprep.subr.mxu0 0.0
        %828 = vmatpush1.msra.mxu0 0.0
        %829 = vmatprep.subr.mxu0 0.0
        %830 = vmatpush1.msra.mxu0 0.0
        %831 = vmatprep.subr.mxu0 0.0
        %832 = vmatpush1.msra.mxu0 0.0
        %833 = vmatprep.subr.mxu0 0.0
        %834 = vmatpush1.msra.mxu0 0.0
        %835 = vmatprep.subr.mxu0 0.0
        %836 = vmatpush1.msra.mxu0 0.0
        %837 = vmatprep.subr.mxu0 0.0
        %838 = vmatpush1.msra.mxu0 0.0
        %839 = vmatprep.subr.mxu0 0.0
        %840 = vmatpush1.msra.mxu0 0.0
        %841 = vmatprep.subr.mxu0 0.0
        %842 = vmatpush1.msra.mxu0 0.0
        %843 = vmatprep.subr.mxu0 0.0
        %844 = vmatpush1.msra.mxu0 0.0
        %845 = vmatprep.subr.mxu0 0.0
        %846 = vmatpush1.msra.mxu0 0.0
        %847 = vmatprep.subr.mxu0 0.0
        %848 = vmatpush1.msra.mxu0 0.0
        %849 = vmatprep.subr.mxu0 0.0
        %850 = vmatpush1.msra.mxu0 0.0
        %851 = vmatprep.subr.mxu0 0.0
        %852 = vmatpush1.msra.mxu0 0.0
        %853 = vmatprep.subr.mxu0 0.0
        %854 = vmatpush1.msra.mxu0 0.0
        %855 = vmatprep.subr.mxu0 0.0
        %856 = vmatpush1.msra.mxu0 0.0
        %857 = vmatprep.subr.mxu0 0.0
        %858 = vmatpush1.msra.mxu0 0.0
        %859 = vmatprep.subr.mxu0 0.0
        %860 = vmatpush1.msra.mxu0 0.0
        %861 = vmatprep.subr.mxu0 0.0
        %862 = vmatpush1.msra.mxu0 0.0
        %863 = vmatprep.subr.mxu0 0.0
        %864 = vmatpush1.msra.mxu0 0.0
        %865 = vmatprep.subr.mxu0 0.0
        %866 = vmatpush1.msra.mxu0 0.0
        %867 = vmatprep.subr.mxu0 0.0
        %868 = vmatpush1.msra.mxu0 0.0
        %869 = vmatprep.mubr.f32.mxu0 0.0
        %870 = vmatmul.mubr.f32.gmra.mrb[0].mxu0 %v799
        %v871 = vpop.f32.mrb[0].mxu0
        %v872 = vadd.f32 0.0, %v871
        %v873 = vpop.f32.mrb[0].mxu0
        %v874 = vadd.f32 0.0, %v873
        %875 = vdwg.mxu0
        %v876 = vadd.f32 %v787, %v872
        %v877 = vadd.f32 %v788, %v874
        %878 = vrot.lane.b32.xlu0 %v376, 110
        %v879 = vpop.permute.xlu0 %878
        %880 = vrot.lane.b32.xlu0 %v372, 110
        %v881 = vpop.permute.xlu0 %880
        %882 = vrot.lane.b32.xlu0 %v377, 110
        %v883 = vpop.permute.xlu0 %882
        %vm884 = vcmask 900096
        %v885 = vsel %vm884, %v879, %v881
        %v886 = vsel %vm884, %v881, %v883
        %v889 = vsel %vm597, %v885, 0.0
        %v890 = vsel %vm598, %v886, 0.0
        %v892 = vsel %vm435, %v414, 0
        %v895 = vsel %vm439, %v889, 0
        %v898 = vsel %vm439, %v890, 0
        %900 = vmatprep.subr.mxu0 %v898
        %901 = vmatpush1.msra.mxu0 %v895
        %902 = vmatprep.subr.mxu0 0.0
        %903 = vmatpush1.msra.mxu0 0.0
        %904 = vmatprep.subr.mxu0 0.0
        %905 = vmatpush1.msra.mxu0 0.0
        %906 = vmatprep.subr.mxu0 0.0
        %907 = vmatpush1.msra.mxu0 0.0
        %908 = vmatprep.subr.mxu0 0.0
        %909 = vmatpush1.msra.mxu0 0.0
        %910 = vmatprep.subr.mxu0 0.0
        %911 = vmatpush1.msra.mxu0 0.0
        %912 = vmatprep.subr.mxu0 0.0
        %913 = vmatpush1.msra.mxu0 0.0
        %914 = vmatprep.subr.mxu0 0.0
        %915 = vmatpush1.msra.mxu0 0.0
        %916 = vmatprep.subr.mxu0 0.0
        %917 = vmatpush1.msra.mxu0 0.0
        %918 = vmatprep.subr.mxu0 0.0
        %919 = vmatpush1.msra.mxu0 0.0
        %920 = vmatprep.subr.mxu0 0.0
        %921 = vmatpush1.msra.mxu0 0.0
        %922 = vmatprep.subr.mxu0 0.0
        %923 = vmatpush1.msra.mxu0 0.0
        %924 = vmatprep.subr.mxu0 0.0
        %925 = vmatpush1.msra.mxu0 0.0
        %926 = vmatprep.subr.mxu0 0.0
        %927 = vmatpush1.msra.mxu0 0.0
        %928 = vmatprep.subr.mxu0 0.0
        %929 = vmatpush1.msra.mxu0 0.0
        %930 = vmatprep.subr.mxu0 0.0
        %931 = vmatpush1.msra.mxu0 0.0
        %932 = vmatprep.subr.mxu0 0.0
        %933 = vmatpush1.msra.mxu0 0.0
        %934 = vmatprep.subr.mxu0 0.0
        %935 = vmatpush1.msra.mxu0 0.0
        %936 = vmatprep.subr.mxu0 0.0
        %937 = vmatpush1.msra.mxu0 0.0
        %938 = vmatprep.subr.mxu0 0.0
        %939 = vmatpush1.msra.mxu0 0.0
        %940 = vmatprep.subr.mxu0 0.0
        %941 = vmatpush1.msra.mxu0 0.0
        %942 = vmatprep.subr.mxu0 0.0
        %943 = vmatpush1.msra.mxu0 0.0
        %944 = vmatprep.subr.mxu0 0.0
        %945 = vmatpush1.msra.mxu0 0.0
        %946 = vmatprep.subr.mxu0 0.0
        %947 = vmatpush1.msra.mxu0 0.0
        %948 = vmatprep.subr.mxu0 0.0
        %949 = vmatpush1.msra.mxu0 0.0
        %950 = vmatprep.subr.mxu0 0.0
        %951 = vmatpush1.msra.mxu0 0.0
        %952 = vmatprep.subr.mxu0 0.0
        %953 = vmatpush1.msra.mxu0 0.0
        %954 = vmatprep.subr.mxu0 0.0
        %955 = vmatpush1.msra.mxu0 0.0
        %956 = vmatprep.subr.mxu0 0.0
        %957 = vmatpush1.msra.mxu0 0.0
        %958 = vmatprep.subr.mxu0 0.0
        %959 = vmatpush1.msra.mxu0 0.0
        %960 = vmatprep.subr.mxu0 0.0
        %961 = vmatpush1.msra.mxu0 0.0
        %962 = vmatprep.subr.mxu0 0.0
        %963 = vmatpush1.msra.mxu0 0.0
        %964 = vmatprep.mubr.f32.mxu0 0.0
        %965 = vmatmul.mubr.f32.gmra.mrb[0].mxu0 %v892
        %v966 = vpop.f32.mrb[0].mxu0
        %v967 = vadd.f32 0.0, %v966
        %v968 = vpop.f32.mrb[0].mxu0
        %v969 = vadd.f32 0.0, %v968
        %970 = vdwg.mxu0
        %v971 = vadd.f32 %v876, %v967
        %v972 = vadd.f32 %v877, %v969
        %973 = vrot.lane.b32.xlu0 %v376, 96
        %v974 = vpop.permute.xlu0 %973
        %975 = vrot.lane.b32.xlu0 %v372, 96
        %v976 = vpop.permute.xlu0 %975
        %977 = vrot.lane.b32.xlu0 %v377, 96
        %v978 = vpop.permute.xlu0 %977
        %vm979 = vcmask 785408
        %v980 = vsel %vm979, %v974, %v976
        %v981 = vsel %vm979, %v976, %v978
        %v984 = vsel %vm420, %v980, 0.0
        %v985 = vsel %vm421, %v981, 0.0
        %v987 = vsel %vm435, %v415, 0
        %v990 = vsel %vm439, %v984, 0
        %v993 = vsel %vm439, %v985, 0
        %995 = vmatprep.subr.mxu0 %v993
        %996 = vmatpush1.msra.mxu0 %v990
        %997 = vmatprep.subr.mxu0 0.0
        %998 = vmatpush1.msra.mxu0 0.0
        %999 = vmatprep.subr.mxu0 0.0
        %1000 = vmatpush1.msra.mxu0 0.0
        %1001 = vmatprep.subr.mxu0 0.0
        %1002 = vmatpush1.msra.mxu0 0.0
        %1003 = vmatprep.subr.mxu0 0.0
        %1004 = vmatpush1.msra.mxu0 0.0
        %1005 = vmatprep.subr.mxu0 0.0
        %1006 = vmatpush1.msra.mxu0 0.0
        %1007 = vmatprep.subr.mxu0 0.0
        %1008 = vmatpush1.msra.mxu0 0.0
        %1009 = vmatprep.subr.mxu0 0.0
        %1010 = vmatpush1.msra.mxu0 0.0
        %1011 = vmatprep.subr.mxu0 0.0
        %1012 = vmatpush1.msra.mxu0 0.0
        %1013 = vmatprep.subr.mxu0 0.0
        %1014 = vmatpush1.msra.mxu0 0.0
        %1015 = vmatprep.subr.mxu0 0.0
        %1016 = vmatpush1.msra.mxu0 0.0
        %1017 = vmatprep.subr.mxu0 0.0
        %1018 = vmatpush1.msra.mxu0 0.0
        %1019 = vmatprep.subr.mxu0 0.0
        %1020 = vmatpush1.msra.mxu0 0.0
        %1021 = vmatprep.subr.mxu0 0.0
        %1022 = vmatpush1.msra.mxu0 0.0
        %1023 = vmatprep.subr.mxu0 0.0
        %1024 = vmatpush1.msra.mxu0 0.0
        %1025 = vmatprep.subr.mxu0 0.0
        %1026 = vmatpush1.msra.mxu0 0.0
        %1027 = vmatprep.subr.mxu0 0.0
        %1028 = vmatpush1.msra.mxu0 0.0
        %1029 = vmatprep.subr.mxu0 0.0
        %1030 = vmatpush1.msra.mxu0 0.0
        %1031 = vmatprep.subr.mxu0 0.0
        %1032 = vmatpush1.msra.mxu0 0.0
        %1033 = vmatprep.subr.mxu0 0.0
        %1034 = vmatpush1.msra.mxu0 0.0
        %1035 = vmatprep.subr.mxu0 0.0
        %1036 = vmatpush1.msra.mxu0 0.0
        %1037 = vmatprep.subr.mxu0 0.0
        %1038 = vmatpush1.msra.mxu0 0.0
        %1039 = vmatprep.subr.mxu0 0.0
        %1040 = vmatpush1.msra.mxu0 0.0
        %1041 = vmatprep.subr.mxu0 0.0
        %1042 = vmatpush1.msra.mxu0 0.0
        %1043 = vmatprep.subr.mxu0 0.0
        %1044 = vmatpush1.msra.mxu0 0.0
        %1045 = vmatprep.subr.mxu0 0.0
        %1046 = vmatpush1.msra.mxu0 0.0
        %1047 = vmatprep.subr.mxu0 0.0
        %1048 = vmatpush1.msra.mxu0 0.0
        %1049 = vmatprep.subr.mxu0 0.0
        %1050 = vmatpush1.msra.mxu0 0.0
        %1051 = vmatprep.subr.mxu0 0.0
        %1052 = vmatpush1.msra.mxu0 0.0
        %1053 = vmatprep.subr.mxu0 0.0
        %1054 = vmatpush1.msra.mxu0 0.0
        %1055 = vmatprep.subr.mxu0 0.0
        %1056 = vmatpush1.msra.mxu0 0.0
        %1057 = vmatprep.subr.mxu0 0.0
        %1058 = vmatpush1.msra.mxu0 0.0
        %1059 = vmatprep.mubr.f32.mxu0 0.0
        %1060 = vmatmul.mubr.f32.gmra.mrb[0].mxu0 %v987
        %v1061 = vpop.f32.mrb[0].mxu0
        %v1062 = vadd.f32 0.0, %v1061
        %v1063 = vpop.f32.mrb[0].mxu0
        %v1064 = vadd.f32 0.0, %v1063
        %1065 = vdwg.mxu0
        %v1066 = vadd.f32 %v971, %v1062
        %v1067 = vadd.f32 %v972, %v1064
        %1068 = vrot.lane.b32.xlu0 %v376, 95
        %v1069 = vpop.permute.xlu0 %1068
        %1070 = vrot.lane.b32.xlu0 %v372, 95
        %v1071 = vpop.permute.xlu0 %1070
        %1072 = vrot.lane.b32.xlu0 %v377, 95
        %v1073 = vpop.permute.xlu0 %1072
        %vm1074 = vcmask 777216
        %v1075 = vsel %vm1074, %v1069, %v1071
        %v1076 = vsel %vm1074, %v1071, %v1073
        %v1078 = vsel %vm435, %v416, 0
        %v1080 = vsel %vm439, %v1075, 0
        %v1082 = vsel %vm439, %v1076, 0
        %1084 = vmatprep.subr.mxu0 %v1082
        %1085 = vmatpush1.msra.mxu0 %v1080
        %1086 = vmatprep.subr.mxu0 0.0
        %1087 = vmatpush1.msra.mxu0 0.0
        %1088 = vmatprep.subr.mxu0 0.0
        %1089 = vmatpush1.msra.mxu0 0.0
        %1090 = vmatprep.subr.mxu0 0.0
        %1091 = vmatpush1.msra.mxu0 0.0
        %1092 = vmatprep.subr.mxu0 0.0
        %1093 = vmatpush1.msra.mxu0 0.0
        %1094 = vmatprep.subr.mxu0 0.0
        %1095 = vmatpush1.msra.mxu0 0.0
        %1096 = vmatprep.subr.mxu0 0.0
        %1097 = vmatpush1.msra.mxu0 0.0
        %1098 = vmatprep.subr.mxu0 0.0
        %1099 = vmatpush1.msra.mxu0 0.0
        %1100 = vmatprep.subr.mxu0 0.0
        %1101 = vmatpush1.msra.mxu0 0.0
        %1102 = vmatprep.subr.mxu0 0.0
        %1103 = vmatpush1.msra.mxu0 0.0
        %1104 = vmatprep.subr.mxu0 0.0
        %1105 = vmatpush1.msra.mxu0 0.0
        %1106 = vmatprep.subr.mxu0 0.0
        %1107 = vmatpush1.msra.mxu0 0.0
        %1108 = vmatprep.subr.mxu0 0.0
        %1109 = vmatpush1.msra.mxu0 0.0
        %1110 = vmatprep.subr.mxu0 0.0
        %1111 = vmatpush1.msra.mxu0 0.0
        %1112 = vmatprep.subr.mxu0 0.0
        %1113 = vmatpush1.msra.mxu0 0.0
        %1114 = vmatprep.subr.mxu0 0.0
        %1115 = vmatpush1.msra.mxu0 0.0
        %1116 = vmatprep.subr.mxu0 0.0
        %1117 = vmatpush1.msra.mxu0 0.0
        %1118 = vmatprep.subr.mxu0 0.0
        %1119 = vmatpush1.msra.mxu0 0.0
        %1120 = vmatprep.subr.mxu0 0.0
        %1121 = vmatpush1.msra.mxu0 0.0
        %1122 = vmatprep.subr.mxu0 0.0
        %1123 = vmatpush1.msra.mxu0 0.0
        %1124 = vmatprep.subr.mxu0 0.0
        %1125 = vmatpush1.msra.mxu0 0.0
        %1126 = vmatprep.subr.mxu0 0.0
        %1127 = vmatpush1.msra.mxu0 0.0
        %1128 = vmatprep.subr.mxu0 0.0
        %1129 = vmatpush1.msra.mxu0 0.0
        %1130 = vmatprep.subr.mxu0 0.0
        %1131 = vmatpush1.msra.mxu0 0.0
        %1132 = vmatprep.subr.mxu0 0.0
        %1133 = vmatpush1.msra.mxu0 0.0
        %1134 = vmatprep.subr.mxu0 0.0
        %1135 = vmatpush1.msra.mxu0 0.0
        %1136 = vmatprep.subr.mxu0 0.0
        %1137 = vmatpush1.msra.mxu0 0.0
        %1138 = vmatprep.subr.mxu0 0.0
        %1139 = vmatpush1.msra.mxu0 0.0
        %1140 = vmatprep.subr.mxu0 0.0
        %1141 = vmatpush1.msra.mxu0 0.0
        %1142 = vmatprep.subr.mxu0 0.0
        %1143 = vmatpush1.msra.mxu0 0.0
        %1144 = vmatprep.subr.mxu0 0.0
        %1145 = vmatpush1.msra.mxu0 0.0
        %1146 = vmatprep.subr.mxu0 0.0
        %1147 = vmatpush1.msra.mxu0 0.0
        %1148 = vmatprep.mubr.f32.mxu0 0.0
        %1149 = vmatmul.mubr.f32.gmra.mrb[0].mxu0 %v1078
        %v1150 = vpop.f32.mrb[0].mxu0
        %v1151 = vadd.f32 0.0, %v1150
        %v1152 = vpop.f32.mrb[0].mxu0
        %v1153 = vadd.f32 0.0, %v1152
        %1154 = vdwg.mxu0
        %v1155 = vadd.f32 %v1066, %v1151
        %v1156 = vadd.f32 %v1067, %v1153
        %1157 = vrot.lane.b32.xlu0 %v376, 94
        %v1158 = vpop.permute.xlu0 %1157
        %1159 = vrot.lane.b32.xlu0 %v372, 94
        %v1160 = vpop.permute.xlu0 %1159
        %1161 = vrot.lane.b32.xlu0 %v377, 94
        %v1162 = vpop.permute.xlu0 %1161
        %vm1163 = vcmask 769024
        %v1164 = vsel %vm1163, %v1158, %v1160
        %v1165 = vsel %vm1163, %v1160, %v1162
        %v1168 = vsel %vm597, %v1164, 0.0
        %v1169 = vsel %vm598, %v1165, 0.0
        %v1171 = vsel %vm435, %v417, 0
        %v1174 = vsel %vm439, %v1168, 0
        %v1177 = vsel %vm439, %v1169, 0
        %1179 = vmatprep.subr.mxu0 %v1177
        %1180 = vmatpush1.msra.mxu0 %v1174
        %1181 = vmatprep.subr.mxu0 0.0
        %1182 = vmatpush1.msra.mxu0 0.0
        %1183 = vmatprep.subr.mxu0 0.0
        %1184 = vmatpush1.msra.mxu0 0.0
        %1185 = vmatprep.subr.mxu0 0.0
        %1186 = vmatpush1.msra.mxu0 0.0
        %1187 = vmatprep.subr.mxu0 0.0
        %1188 = vmatpush1.msra.mxu0 0.0
        %1189 = vmatprep.subr.mxu0 0.0
        %1190 = vmatpush1.msra.mxu0 0.0
        %1191 = vmatprep.subr.mxu0 0.0
        %1192 = vmatpush1.msra.mxu0 0.0
        %1193 = vmatprep.subr.mxu0 0.0
        %1194 = vmatpush1.msra.mxu0 0.0
        %1195 = vmatprep.subr.mxu0 0.0
        %1196 = vmatpush1.msra.mxu0 0.0
        %1197 = vmatprep.subr.mxu0 0.0
        %1198 = vmatpush1.msra.mxu0 0.0
        %1199 = vmatprep.subr.mxu0 0.0
        %1200 = vmatpush1.msra.mxu0 0.0
        %1201 = vmatprep.subr.mxu0 0.0
        %1202 = vmatpush1.msra.mxu0 0.0
        %1203 = vmatprep.subr.mxu0 0.0
        %1204 = vmatpush1.msra.mxu0 0.0
        %1205 = vmatprep.subr.mxu0 0.0
        %1206 = vmatpush1.msra.mxu0 0.0
        %1207 = vmatprep.subr.mxu0 0.0
        %1208 = vmatpush1.msra.mxu0 0.0
        %1209 = vmatprep.subr.mxu0 0.0
        %1210 = vmatpush1.msra.mxu0 0.0
        %1211 = vmatprep.subr.mxu0 0.0
        %1212 = vmatpush1.msra.mxu0 0.0
        %1213 = vmatprep.subr.mxu0 0.0
        %1214 = vmatpush1.msra.mxu0 0.0
        %1215 = vmatprep.subr.mxu0 0.0
        %1216 = vmatpush1.msra.mxu0 0.0
        %1217 = vmatprep.subr.mxu0 0.0
        %1218 = vmatpush1.msra.mxu0 0.0
        %1219 = vmatprep.subr.mxu0 0.0
        %1220 = vmatpush1.msra.mxu0 0.0
        %1221 = vmatprep.subr.mxu0 0.0
        %1222 = vmatpush1.msra.mxu0 0.0
        %1223 = vmatprep.subr.mxu0 0.0
        %1224 = vmatpush1.msra.mxu0 0.0
        %1225 = vmatprep.subr.mxu0 0.0
        %1226 = vmatpush1.msra.mxu0 0.0
        %1227 = vmatprep.subr.mxu0 0.0
        %1228 = vmatpush1.msra.mxu0 0.0
        %1229 = vmatprep.subr.mxu0 0.0
        %1230 = vmatpush1.msra.mxu0 0.0
        %1231 = vmatprep.subr.mxu0 0.0
        %1232 = vmatpush1.msra.mxu0 0.0
        %1233 = vmatprep.subr.mxu0 0.0
        %1234 = vmatpush1.msra.mxu0 0.0
        %1235 = vmatprep.subr.mxu0 0.0
        %1236 = vmatpush1.msra.mxu0 0.0
        %1237 = vmatprep.subr.mxu0 0.0
        %1238 = vmatpush1.msra.mxu0 0.0
        %1239 = vmatprep.subr.mxu0 0.0
        %1240 = vmatpush1.msra.mxu0 0.0
        %1241 = vmatprep.subr.mxu0 0.0
        %1242 = vmatpush1.msra.mxu0 0.0
        %1243 = vmatprep.mubr.f32.mxu0 0.0
        %1244 = vmatmul.mubr.f32.gmra.mrb[0].mxu0 %v1171
        %v1245 = vpop.f32.mrb[0].mxu0
        %v1246 = vadd.f32 0.0, %v1245
        %v1247 = vpop.f32.mrb[0].mxu0
        %v1248 = vadd.f32 0.0, %v1247
        %1249 = vdwg.mxu0
        %v1250 = vadd.f32 %v1155, %v1246
        %v1251 = vadd.f32 %v1156, %v1248
        %v1252 = vld [vmem:[%s4] sm:$0xf]
        %1254 = vset.pattern.permute.xlu0 0
        %1255 = vperm.xlu0 %1254, %v1252
        %v1256 = vpop.permute.xlu0 %1255
        %v1258 = vadd.f32 %v1250, %v1256
        %v1259 = vadd.f32 %v1251, %v1256
        %v1260 = vmax.f32 %v1258, 0.0
        %v1261 = vmax.f32 %v1259, 0.0
        %v1262 = vld [vmem:[%s5] sm:$0xff]
        %v1263 = vld [vmem:[%s5 + $0x8] sm:$0xff]
        %v1264 = vld [vmem:[%s6] sm:$0xff]
        %v1265 = vld [vmem:[%s6 + $0x8] sm:$0xff]
        %1267 = vset.pattern.permute.xlu0 0
        %1268 = vperm.xlu0 %1267, %v1264
        %v1269 = vpop.permute.xlu0 %1268
        %1272 = vset.pattern.permute.xlu0 0
        %1273 = vperm.xlu0 %1272, %v1265
        %v1274 = vpop.permute.xlu0 %1273
        %v1277 = vsel %vm435, %v1262, 0
        %v1280 = vsel %vm435, %v1263, 0
        %v1283 = vsel %vm439, %v1260, 0
        %v1286 = vsel %vm439, %v1261, 0
        %1288 = vmatprep.subr.mxu0 %v1286
        %1289 = vmatpush1.msra.mxu0 %v1283
        %1290 = vmatprep.subr.mxu0 0.0
        %1291 = vmatpush1.msra.mxu0 0.0
        %1292 = vmatprep.subr.mxu0 0.0
        %1293 = vmatpush1.msra.mxu0 0.0
        %1294 = vmatprep.subr.mxu0 0.0
        %1295 = vmatpush1.msra.mxu0 0.0
        %1296 = vmatprep.subr.mxu0 0.0
        %1297 = vmatpush1.msra.mxu0 0.0
        %1298 = vmatprep.subr.mxu0 0.0
        %1299 = vmatpush1.msra.mxu0 0.0
        %1300 = vmatprep.subr.mxu0 0.0
        %1301 = vmatpush1.msra.mxu0 0.0
        %1302 = vmatprep.subr.mxu0 0.0
        %1303 = vmatpush1.msra.mxu0 0.0
        %1304 = vmatprep.subr.mxu0 0.0
        %1305 = vmatpush1.msra.mxu0 0.0
        %1306 = vmatprep.subr.mxu0 0.0
        %1307 = vmatpush1.msra.mxu0 0.0
        %1308 = vmatprep.subr.mxu0 0.0
        %1309 = vmatpush1.msra.mxu0 0.0
        %1310 = vmatprep.subr.mxu0 0.0
        %1311 = vmatpush1.msra.mxu0 0.0
        %1312 = vmatprep.subr.mxu0 0.0
        %1313 = vmatpush1.msra.mxu0 0.0
        %1314 = vmatprep.subr.mxu0 0.0
        %1315 = vmatpush1.msra.mxu0 0.0
        %1316 = vmatprep.subr.mxu0 0.0
        %1317 = vmatpush1.msra.mxu0 0.0
        %1318 = vmatprep.subr.mxu0 0.0
        %1319 = vmatpush1.msra.mxu0 0.0
        %1320 = vmatprep.subr.mxu0 0.0
        %1321 = vmatpush1.msra.mxu0 0.0
        %1322 = vmatprep.subr.mxu0 0.0
        %1323 = vmatpush1.msra.mxu0 0.0
        %1324 = vmatprep.subr.mxu0 0.0
        %1325 = vmatpush1.msra.mxu0 0.0
        %1326 = vmatprep.subr.mxu0 0.0
        %1327 = vmatpush1.msra.mxu0 0.0
        %1328 = vmatprep.subr.mxu0 0.0
        %1329 = vmatpush1.msra.mxu0 0.0
        %1330 = vmatprep.subr.mxu0 0.0
        %1331 = vmatpush1.msra.mxu0 0.0
        %1332 = vmatprep.subr.mxu0 0.0
        %1333 = vmatpush1.msra.mxu0 0.0
        %1334 = vmatprep.subr.mxu0 0.0
        %1335 = vmatpush1.msra.mxu0 0.0
        %1336 = vmatprep.subr.mxu0 0.0
        %1337 = vmatpush1.msra.mxu0 0.0
        %1338 = vmatprep.subr.mxu0 0.0
        %1339 = vmatpush1.msra.mxu0 0.0
        %1340 = vmatprep.subr.mxu0 0.0
        %1341 = vmatpush1.msra.mxu0 0.0
        %1342 = vmatprep.subr.mxu0 0.0
        %1343 = vmatpush1.msra.mxu0 0.0
        %1344 = vmatprep.subr.mxu0 0.0
        %1345 = vmatpush1.msra.mxu0 0.0
        %1346 = vmatprep.subr.mxu0 0.0
        %1347 = vmatpush1.msra.mxu0 0.0
        %1348 = vmatprep.subr.mxu0 0.0
        %1349 = vmatpush1.msra.mxu0 0.0
        %1350 = vmatprep.subr.mxu0 0.0
        %1351 = vmatpush1.msra.mxu0 0.0
        %1352 = vmatprep.mubr.f32.mxu0 0.0
        %1353 = vmatmul.mubr.f32.gmra.mrb[0].mxu0 %v1277
        %v1354 = vpop.f32.mrb[0].mxu0
        %v1355 = vadd.f32 %v1269, %v1354
        %v1356 = vpop.f32.mrb[0].mxu0
        %v1357 = vadd.f32 %v1269, %v1356
        %1358 = vmatprep.mubr.f32.mxu0 0.0
        %1359 = vmatmul.mubr.f32.gmra.mrb[0].mxu0 %v1280
        %v1360 = vpop.f32.mrb[0].mxu0
        %v1361 = vadd.f32 %v1274, %v1360
        %v1362 = vpop.f32.mrb[0].mxu0
        %v1363 = vadd.f32 %v1274, %v1362
        %1364 = vdwg.mxu0
        %v1365 = vmax.f32 %v1355, 0.0
        %v1366 = vmax.f32 %v1357, 0.0
        %v1367 = vmax.f32 %v1361, 0.0
        %v1368 = vmax.f32 %v1363, 0.0
        %v1369 = vadd.f32 %v1365, %v278
        %v1370 = vadd.f32 %v1366, %v279
        %v1371 = vadd.f32 %v1367, %v280
        %v1372 = vadd.f32 %v1368, %v281
        %1373 = vst [vmem:[%s271] sm:$0xff] %v1369
        %1374 = vst [vmem:[%s271 + $0x8] sm:$0xff] %v1370
        %1375 = vst [vmem:[%s271 + $0x10] sm:$0xff] %v1371
        %1376 = vst [vmem:[%s271 + $0x18] sm:$0xff] %v1372
        %s1377 = sand.u32 %s181, 1
        %s1378 = scalar_lea.sflag [#allocation3], %s1377
        %s1379 = sand.u32 %s181, 1
        %s1380 = smul.addr %s1379, 32
        %s1381 = scalar_lea.vmem [#allocation2], %s1380
        // Predicated region
        $region49: #{tpu_custom_call.1} parent=47 // pred_check
          %p1382 = pneg %p191
        $region50: #{tpu_custom_call.1} parent=47 // pred_check_branch
          %1384 = sbr.rel (%p1382) target = $region52
        $region51: #{tpu_custom_call.1} parent=47 // pred_region
          %s1386 = ssub.s32 512, 512
          %1387 = vsyncadd %s1378, %s1386
          %s1388 = smul.addr %s21, 4
          %s1389 = smul.addr %s1388, 128
          %s1390 = scalar_lea.hbm %s7, %s1389
          %s1391 = sshll.u32 %s1381, 4
          %s1392 = int_to_ptr.vmem [resolvable:$true] %s1391
          %1397 = dma.vmem_to_hbm [thread:$0]  %s1392, 512, %s1390, %s1378, 256, 256, 16
        $region52: #{tpu_custom_call.1} parent=47 // pred_fallthru
          _
      $region48: #{tpu_custom_call.1} parent=5 // pred_fallthru
        _
      %p1398 = scmp.le.s32.totalorder 2, %s16
      // Predicated region
      $region53: #{tpu_custom_call.1} parent=5 // pred_check
        %p1399 = pneg %p1398
      $region54: #{tpu_custom_call.1} parent=5 // pred_check_branch
        %1401 = sbr.rel (%p1399) target = $region56
      $region55: #{tpu_custom_call.1} parent=5 // pred_region
        %s1402 = ssub.s32 %s16, 2
        // Predicated region
        $region57: #{tpu_custom_call.1} parent=55 // pred_check
          %p1403 = pneg %p197
        $region58: #{tpu_custom_call.1} parent=55 // pred_check_branch
          %1405 = sbr.rel (%p1403) target = $region60
        $region59: #{tpu_custom_call.1} parent=55 // pred_region
          %s1406 = sand.u32 %s182, 1
          %s1407 = scalar_lea.sflag [#allocation3], %s1406
          %s1408 = sand.u32 %s182, 1
          %s1409 = smul.addr %s1408, 32
          %s1410 = scalar_lea.vmem [#allocation2], %s1409
          %1411 = dma.done %s1407, 512
        $region60: #{tpu_custom_call.1} parent=55 // pred_fallthru
          _
      $region56: #{tpu_custom_call.1} parent=5 // pred_fallthru
        _
    $region6: #{tpu_custom_call.1} parent=1 // loop_footer
      %s20 = sadd.s32 1, %s16
    $region7: #{tpu_custom_call.1} parent=1 // loop_footer_branch
      %15 = sbr.rel target = $region3
    $region8: #{tpu_custom_call.1} parent=1 // loop_exit
      _
    %1412 = vsyncpa [#allocation3], 1
    %s1413 = scalar_lea.sflag [#allocation3], 1
    %1414 = vsyncpa %s1413, 1

</llo_original>
